<compile_context>
chip_gen: v6e
topology: v6e:2x2x1
jax: 0.10.0
libtpu: 0.0.40
codegen_flags: <defaults>
</compile_context>

<pallas_src>
import functools

import jax
import jax.numpy as jnp
from jax.experimental import pallas as pl
from jax.experimental.pallas import tpu as pltpu

BN_EPS = 1e-5
LEAKY_SLOPE = 0.2          # module uses nn.LeakyReLU(0.2)
LANE = 128
SUB = 16                   # bf16 sublane packing; weight-slab row offsets align to this

# Row indices inside the packed f32 "rows" slab (bias / gamma / beta vectors).
(R_EB1, R_EG1, R_EBETA1,
 R_EB2, R_EG2, R_EBETA2,
 R_BMV,
 R_DB1, R_DG1, R_DBETA1,
 R_DB2, R_DG2, R_DBETA2,
 R_BF, N_ROWS) = range(15)


def _round_up(x, m):
    return ((x + m - 1) // m) * m


def _slab_layout(in_pad, h1, h2, latent):
    """Static row offsets of each weight matrix inside the two bf16 slabs."""
    # slab A: matrices with h1 columns  (ew1: in_pad->h1, dw2: h2->h1)
    a_offs = {"ew1": 0, "dw2": _round_up(in_pad, SUB)}
    a_rows = a_offs["dw2"] + _round_up(h2, SUB)
    # slab B: the rest, columns zero-padded to a common width
    b_cols = max(h2, 2 * latent, in_pad)
    b_offs, off = {}, 0
    for name, r in (("ew2", h1), ("wmuvar", h2), ("dw1", latent), ("wf", h1)):
        b_offs[name] = off
        off += _round_up(r, SUB)
    b_rows = off
    return a_offs, a_rows, b_offs, b_rows, b_cols


# ---------------------------------------------------------------------------
# Kernel
# ---------------------------------------------------------------------------
def vae_fwd_kernel(x_ref, eps_ref, wa_ref, wb_ref, rows_ref,
                   recon_ref, mulogvar_ref,
                   *, in_pad, h1, h2, latent, a_offs, b_offs, bf16_epilogue):
    act_dtype = jnp.bfloat16 if bf16_epilogue else jnp.float32

    def vec(idx, n):                       # (1, n) f32 row from the packed slab
        return rows_ref[idx:idx + 1, 0:n]

    def linear(h, w, b):                   # bf16 operands, f32 MXU accumulation
        return jnp.dot(h.astype(jnp.bfloat16), w,
                       preferred_element_type=jnp.float32) + b

    def leaky_relu(h):
        return jnp.where(h > 0, h, h * LEAKY_SLOPE)

    def batchnorm(h, gamma, beta):
        # Training-mode BN over the per-block batch axis.  Two-pass centered
        # variance; reductions and rsqrt in f32, scale/shift apply in act_dtype.
        hf = h.astype(jnp.float32)
        mean = jnp.mean(hf, axis=0, keepdims=True)
        c = hf - mean
        var = jnp.mean(c * c, axis=0, keepdims=True)
        scale = gamma * jax.lax.rsqrt(var + BN_EPS)
        shift = beta - mean * scale
        return h * scale.astype(h.dtype) + shift.astype(h.dtype)

    def block(h, w, bias, gamma, beta):
        h = linear(h, w, bias).astype(act_dtype)
        return batchnorm(leaky_relu(h), gamma, beta)

    # ----- encoder -----
    x = x_ref[...]                                         # bf16, lane-padded
    h = block(x, wa_ref[a_offs["ew1"]:a_offs["ew1"] + in_pad, :],
              vec(R_EB1, h1), vec(R_EG1, h1), vec(R_EBETA1, h1))
    h = block(h, wb_ref[b_offs["ew2"]:b_offs["ew2"] + h1, 0:h2],
              vec(R_EB2, h2), vec(R_EG2, h2), vec(R_EBETA2, h2))

    # ----- fused mu | log_var head (lane-dense 2*latent-wide output) -----
    mulogvar = linear(
        h, wb_ref[b_offs["wmuvar"]:b_offs["wmuvar"] + h2, 0:2 * latent],
        vec(R_BMV, 2 * latent))
    mu = mulogvar[:, :latent]
    log_var = mulogvar[:, latent:]

    # ----- reparameterize (eps supplied from outside for determinism) -----
    std = jnp.exp(0.5 * log_var)
    z = mu + eps_ref[...] * std

    # ----- decoder -----
    d = block(z, wb_ref[b_offs["dw1"]:b_offs["dw1"] + latent, 0:h2],
              vec(R_DB1, h2), vec(R_DG1, h2), vec(R_DBETA1, h2))
    d = block(d, wa_ref[a_offs["dw2"]:a_offs["dw2"] + h2, :],
              vec(R_DB2, h1), vec(R_DG2, h1), vec(R_DBETA2, h1))

    # final layer: weight columns zero-padded to 128 lanes -> unmasked store
    recon_ref[...] = linear(
        d, wb_ref[b_offs["wf"]:b_offs["wf"] + h1, 0:in_pad], vec(R_BF, in_pad))
    mulogvar_ref[...] = mulogvar


# ---------------------------------------------------------------------------
# Parameters
# ---------------------------------------------------------------------------
def init_params(key, input_dim, hidden_dims, latent_dim):
    """Logical (unpadded, f32) parameters. Linear weights stored as (in, out)."""
    params = {}

    def linear_init(k, fan_in, fan_out):
        kw, kb = jax.random.split(k)
        bound = 1.0 / jnp.sqrt(fan_in)
        w = jax.random.uniform(kw, (fan_in, fan_out), jnp.float32, -bound, bound)
        b = jax.random.uniform(kb, (1, fan_out), jnp.float32, -bound, bound)
        return w, b

    keys = jax.random.split(key, 8)
    h1, h2 = hidden_dims

    params["ew1"], params["eb1"] = linear_init(keys[0], input_dim, h1)
    params["eg1"] = jnp.ones((1, h1), jnp.float32)
    params["ebeta1"] = jnp.zeros((1, h1), jnp.float32)
    params["ew2"], params["eb2"] = linear_init(keys[1], h1, h2)
    params["eg2"] = jnp.ones((1, h2), jnp.float32)
    params["ebeta2"] = jnp.zeros((1, h2), jnp.float32)
    params["wmu"], params["bmu"] = linear_init(keys[2], h2, latent_dim)
    params["wvar"], params["bvar"] = linear_init(keys[3], h2, latent_dim)
    params["dw1"], params["db1"] = linear_init(keys[4], latent_dim, h2)
    params["dg1"] = jnp.ones((1, h2), jnp.float32)
    params["dbeta1"] = jnp.zeros((1, h2), jnp.float32)
    params["dw2"], params["db2"] = linear_init(keys[5], h2, h1)
    params["dg2"] = jnp.ones((1, h1), jnp.float32)
    params["dbeta2"] = jnp.zeros((1, h1), jnp.float32)
    params["wf"], params["bf"] = linear_init(keys[6], h1, input_dim)
    return params


def prepare_kernel_slabs(params, input_dim, hidden_dims, latent_dim):
    """Pack all parameters into 3 slabs: 2x bf16 weight slabs + 1x f32 rows slab."""
    h1, h2 = hidden_dims
    in_pad = _round_up(input_dim, LANE)
    a_offs, a_rows, b_offs, b_rows, b_cols = _slab_layout(in_pad, h1, h2, latent_dim)

    ew1 = jnp.pad(params["ew1"], ((0, in_pad - input_dim), (0, 0)))   # zero input rows
    wf = jnp.pad(params["wf"], ((0, 0), (0, in_pad - input_dim)))     # zero output cols
    wmuvar = jnp.concatenate([params["wmu"], params["wvar"]], axis=1)

    wa = jnp.zeros((a_rows, h1), jnp.float32)
    wa = wa.at[a_offs["ew1"]:a_offs["ew1"] + in_pad, :].set(ew1)
    wa = wa.at[a_offs["dw2"]:a_offs["dw2"] + h2, :].set(params["dw2"])

    wb = jnp.zeros((b_rows, b_cols), jnp.float32)
    wb = wb.at[b_offs["ew2"]:b_offs["ew2"] + h1, :h2].set(params["ew2"])
    wb = wb.at[b_offs["wmuvar"]:b_offs["wmuvar"] + h2, :2 * latent_dim].set(wmuvar)
    wb = wb.at[b_offs["dw1"]:b_offs["dw1"] + latent_dim, :h2].set(params["dw1"])
    wb = wb.at[b_offs["wf"]:b_offs["wf"] + h1, :in_pad].set(wf)

    bmuvar = jnp.concatenate([params["bmu"], params["bvar"]], axis=1)
    bf = jnp.pad(params["bf"], ((0, 0), (0, in_pad - input_dim)))
    vecs = [
        (R_EB1, params["eb1"]), (R_EG1, params["eg1"]), (R_EBETA1, params["ebeta1"]),
        (R_EB2, params["eb2"]), (R_EG2, params["eg2"]), (R_EBETA2, params["ebeta2"]),
        (R_BMV, bmuvar),
        (R_DB1, params["db1"]), (R_DG1, params["dg1"]), (R_DBETA1, params["dbeta1"]),
        (R_DB2, params["db2"]), (R_DG2, params["dg2"]), (R_DBETA2, params["dbeta2"]),
        (R_BF, bf),
    ]
    rows_cols = max(h1, h2, 2 * latent_dim, in_pad)
    rows = jnp.zeros((_round_up(N_ROWS, 8), rows_cols), jnp.float32)
    for idx, v in vecs:
        rows = rows.at[idx, :v.shape[1]].set(v[0])

    return {"wa": wa.astype(jnp.bfloat16),
            "wb": wb.astype(jnp.bfloat16),
            "rows": rows}


# ---------------------------------------------------------------------------
# Wrapper
# ---------------------------------------------------------------------------
@functools.partial(
    jax.jit,
    static_argnames=("input_dim", "hidden_dims", "latent_dim", "bf16_epilogue"))
def tabular_vae_forward(x, eps, slabs, *, input_dim, hidden_dims, latent_dim,
                        bf16_epilogue=False):
    """x: (num_batches, batch, input_dim).  Each leading slice is an independent
    forward pass of the module (BatchNorm statistics are per mini-batch)."""
    num_batches, batch, _ = x.shape
    h1, h2 = hidden_dims
    in_pad = _round_up(input_dim, LANE)
    a_offs, _, b_offs, _, _ = _slab_layout(in_pad, h1, h2, latent_dim)

    # Lane-pad + cast to bf16 once in the wrapper (halves the x DMA bytes).
    x_pad = jnp.pad(x, ((0, 0), (0, 0), (0, in_pad - input_dim))).astype(jnp.bfloat16)

    kernel = functools.partial(
        vae_fwd_kernel, in_pad=in_pad, h1=h1, h2=h2, latent=latent_dim,
        a_offs=a_offs, b_offs=b_offs, bf16_epilogue=bf16_epilogue)

    def resident(shape):                       # whole-array block, fetched once
        return pl.BlockSpec(shape, lambda i: (0, 0))

    def per_batch(n):                          # one mini-batch per grid step
        return pl.BlockSpec((None, batch, n), lambda i: (i, 0, 0))

    out_shapes = (
        jax.ShapeDtypeStruct((num_batches, batch, in_pad), jnp.float32),
        jax.ShapeDtypeStruct((num_batches, batch, 2 * latent_dim), jnp.float32),
    )

    # Advisory cost estimate for the XLA scheduler around this custom call.
    rows_total = num_batches * batch
    matmul_terms = (in_pad * h1 + h1 * h2 + h2 * 2 * latent_dim
                    + latent_dim * h2 + h2 * h1 + h1 * in_pad)
    cost = pl.CostEstimate(
        flops=int(2 * rows_total * matmul_terms),
        transcendentals=int(rows_total * latent_dim + 2 * num_batches * (h1 + h2)),
        bytes_accessed=int(
            sum(int(v.size) * v.dtype.itemsize for v in slabs.values())
            + int(x_pad.size) * 2 + int(eps.size) * 4
            + rows_total * (in_pad + 2 * latent_dim) * 4),
    )

    recon_pad, mulogvar = pl.pallas_call(
        kernel,
        grid=(num_batches,),
        in_specs=[per_batch(in_pad),            # x   (bf16)
                  per_batch(latent_dim),        # eps (f32)
                  resident(slabs["wa"].shape),
                  resident(slabs["wb"].shape),
                  resident(slabs["rows"].shape)],
        out_specs=(per_batch(in_pad), per_batch(2 * latent_dim)),
        out_shape=out_shapes,
        compiler_params=pltpu.CompilerParams(
            # Independent mini-batches -> v7x megacore split for free.
            dimension_semantics=("parallel",)),
        cost_estimate=cost,
    )(x_pad, eps, slabs["wa"], slabs["wb"], slabs["rows"])

    recon = recon_pad[..., :input_dim]
    mu = mulogvar[..., :latent_dim]
    log_var = mulogvar[..., latent_dim:]
    return recon, mu, log_var


# ---------------------------------------------------------------------------
# Pure-JAX f32 reference (single mini-batch) for a loose sanity check.
# ---------------------------------------------------------------------------
def _reference_forward(params, x, eps):
    def lin(h, w, b):
        return h @ w + b

    def lrelu(h):
        return jnp.where(h > 0, h, LEAKY_SLOPE * h)

    def bn(h, g, b):
        m = jnp.mean(h, axis=0, keepdims=True)
        v = jnp.mean((h - m) ** 2, axis=0, keepdims=True)
        return (h - m) / jnp.sqrt(v + BN_EPS) * g + b

    h = bn(lrelu(lin(x, params["ew1"], params["eb1"])), params["eg1"], params["ebeta1"])
    h = bn(lrelu(lin(h, params["ew2"], params["eb2"])), params["eg2"], params["ebeta2"])
    mu = lin(h, params["wmu"], params["bmu"])
    log_var = lin(h, params["wvar"], params["bvar"])
    z = mu + eps * jnp.exp(0.5 * log_var)
    d = bn(lrelu(lin(z, params["dw1"], params["db1"])), params["dg1"], params["dbeta1"])
    d = bn(lrelu(lin(d, params["dw2"], params["db2"])), params["dg2"], params["dbeta2"])
    recon = lin(d, params["wf"], params["bf"])
    return recon, mu, log_var


if __name__ == "__main__":
    input_dim = 32
    hidden_dims = (256, 128)
    latent_dim = 64
    num_batches = 4        # leading 'parallel' grid axis (independent mini-batches)
    batch = 16             # rows per mini-batch (BN statistics over this axis)

    key = jax.random.PRNGKey(0)
    k_x, k_eps, k_params = jax.random.split(key, 3)
    x = jax.random.normal(k_x, (num_batches, batch, input_dim), jnp.float32)
    eps = jax.random.normal(k_eps, (num_batches, batch, latent_dim), jnp.float32)

    params = init_params(k_params, input_dim, hidden_dims, latent_dim)
    slabs = prepare_kernel_slabs(params, input_dim, hidden_dims, latent_dim)

    # bf16 elementwise epilogue only on bf16-VPU generations (v6e / v7x).
    kind = jax.devices()[0].device_kind.lower()
    bf16_epi = any(tag in kind for tag in ("v6", "v7"))

    recon, mu, log_var = tabular_vae_forward(
        x, eps, slabs, input_dim=input_dim, hidden_dims=hidden_dims,
        latent_dim=latent_dim, bf16_epilogue=bf16_epi)
    jax.block_until_ready((recon, mu, log_var))

    assert recon.shape == (num_batches, batch, input_dim)
    assert mu.shape == (num_batches, batch, latent_dim)
    assert log_var.shape == (num_batches, batch, latent_dim)

    # Loose sanity check vs. f32 reference (bf16 MXU operands -> ~1e-2 relative
    # deviation expected; this bound only catches gross errors).
    ref_recon, ref_mu, ref_logvar = jax.vmap(
        functools.partial(_reference_forward, params))(x, eps)
    for got, want in ((recon, ref_recon), (mu, ref_mu), (log_var, ref_logvar)):
        assert bool(jnp.all(jnp.isfinite(got)))
        assert float(jnp.max(jnp.abs(got - want))) < 0.5

    print("KERNEL_OK")
</pallas_src>

<mosaic_0001>
module attributes {stable_mosaic.version = 11 : i64} {
  func.func @vae_fwd_kernel(%arg0: i32, %arg1: memref<1x16x128xbf16, #tpu.memory_space<vmem>>, %arg2: memref<1x16x64xf32, #tpu.memory_space<vmem>>, %arg3: memref<256x256xbf16, #tpu.memory_space<vmem>>, %arg4: memref<704x128xbf16, #tpu.memory_space<vmem>>, %arg5: memref<16x256xf32, #tpu.memory_space<vmem>>, %arg6: memref<1x16x128xf32, #tpu.memory_space<vmem>>, %arg7: memref<1x16x128xf32, #tpu.memory_space<vmem>>) attributes {dimension_semantics = [#tpu.dimension_semantics<parallel>], iteration_bounds = array<i64: 4>, scalar_prefetch = 0 : i64, scratch_operands = 0 : i64, tpu.core_type = #tpu.core_type<tc>, window_params = [{transform_indices = @transform_0, window_bounds = array<i64: 1, 16, 128>}, {transform_indices = @transform_1, window_bounds = array<i64: 1, 16, 64>}, {pipeline_mode = #tpu.pipeline_mode<synchronous>, transform_indices = @transform_2, window_bounds = array<i64: 256, 256>}, {pipeline_mode = #tpu.pipeline_mode<synchronous>, transform_indices = @transform_3, window_bounds = array<i64: 704, 128>}, {pipeline_mode = #tpu.pipeline_mode<synchronous>, transform_indices = @transform_4, window_bounds = array<i64: 16, 256>}, {transform_indices = @transform_5, window_bounds = array<i64: 1, 16, 128>}, {transform_indices = @transform_6, window_bounds = array<i64: 1, 16, 128>}]} {
    %c0 = arith.constant 0 : index
    %c0_0 = arith.constant 0 : index
    %c0_1 = arith.constant 0 : index
    %0 = vector.load %arg1[%c0, %c0_0, %c0_1] : memref<1x16x128xbf16, #tpu.memory_space<vmem>>, vector<1x16x128xbf16>
    %1 = vector.shape_cast %0 : vector<1x16x128xbf16> to vector<16x128xbf16>
    %c0_2 = arith.constant 0 : index
    %c0_3 = arith.constant 0 : index
    %2 = vector.load %arg3[%c0_2, %c0_3] : memref<256x256xbf16, #tpu.memory_space<vmem>>, vector<128x256xbf16>
    %c0_4 = arith.constant 0 : index
    %c0_5 = arith.constant 0 : index
    %3 = vector.load %arg5[%c0_4, %c0_5] : memref<16x256xf32, #tpu.memory_space<vmem>>, vector<1x256xf32>
    %c1 = arith.constant 1 : index
    %c0_6 = arith.constant 0 : index
    %4 = vector.load %arg5[%c1, %c0_6] : memref<16x256xf32, #tpu.memory_space<vmem>>, vector<1x256xf32>
    %c2 = arith.constant 2 : index
    %c0_7 = arith.constant 0 : index
    %5 = vector.load %arg5[%c2, %c0_7] : memref<16x256xf32, #tpu.memory_space<vmem>>, vector<1x256xf32>
    %cst = arith.constant dense<0.000000e+00> : vector<16x256xf32>
    %6 = tpu.matmul %1, %2, %cst {dimension_numbers = #tpu.dot_dimension_numbers<[1], [0], [0], [1], [0, 0, 1, 1], [], []>} : vector<16x128xbf16>, vector<128x256xbf16>, vector<16x256xf32> -> vector<16x256xf32>
    %7 = vector.broadcast %3 : vector<1x256xf32> to vector<16x256xf32>
    %8 = arith.addf %6, %7 : vector<16x256xf32>
    %cst_8 = arith.constant 0.000000e+00 : f32
    %9 = vector.broadcast %cst_8 : f32 to vector<16x256xf32>
    %10 = arith.cmpf ogt, %8, %9 : vector<16x256xf32>
    %cst_9 = arith.constant 2.000000e-01 : f32
    %11 = vector.broadcast %cst_9 : f32 to vector<16x256xf32>
    %12 = arith.mulf %8, %11 : vector<16x256xf32>
    %13 = arith.select %10, %8, %12 : vector<16x256xi1>, vector<16x256xf32>
    %cst_10 = arith.constant dense<0.000000e+00> : vector<256xf32>
    %14 = vector.multi_reduction <add>, %13, %cst_10 [0] : vector<16x256xf32> to vector<256xf32>
    %15 = vector.shape_cast %14 : vector<256xf32> to vector<1x256xf32>
    %cst_11 = arith.constant 1.600000e+01 : f32
    %16 = vector.broadcast %cst_11 : f32 to vector<1x256xf32>
    %17 = arith.divf %15, %16 : vector<1x256xf32>
    %18 = vector.broadcast %17 : vector<1x256xf32> to vector<16x256xf32>
    %19 = arith.subf %13, %18 : vector<16x256xf32>
    %20 = arith.mulf %19, %19 : vector<16x256xf32>
    %cst_12 = arith.constant dense<0.000000e+00> : vector<256xf32>
    %21 = vector.multi_reduction <add>, %20, %cst_12 [0] : vector<16x256xf32> to vector<256xf32>
    %22 = vector.shape_cast %21 : vector<256xf32> to vector<1x256xf32>
    %cst_13 = arith.constant 1.600000e+01 : f32
    %23 = vector.broadcast %cst_13 : f32 to vector<1x256xf32>
    %24 = arith.divf %22, %23 : vector<1x256xf32>
    %cst_14 = arith.constant 9.99999974E-6 : f32
    %25 = vector.broadcast %cst_14 : f32 to vector<1x256xf32>
    %26 = arith.addf %24, %25 : vector<1x256xf32>
    %27 = math.rsqrt %26 : vector<1x256xf32>
    %28 = arith.mulf %4, %27 : vector<1x256xf32>
    %29 = arith.mulf %17, %28 : vector<1x256xf32>
    %30 = arith.subf %5, %29 : vector<1x256xf32>
    %31 = vector.broadcast %28 : vector<1x256xf32> to vector<16x256xf32>
    %32 = arith.mulf %13, %31 : vector<16x256xf32>
    %33 = vector.broadcast %30 : vector<1x256xf32> to vector<16x256xf32>
    %34 = arith.addf %32, %33 : vector<16x256xf32>
    %c0_15 = arith.constant 0 : index
    %c0_16 = arith.constant 0 : index
    %35 = vector.load %arg4[%c0_15, %c0_16] : memref<704x128xbf16, #tpu.memory_space<vmem>>, vector<256x128xbf16>
    %c3 = arith.constant 3 : index
    %c0_17 = arith.constant 0 : index
    %36 = vector.load %arg5[%c3, %c0_17] : memref<16x256xf32, #tpu.memory_space<vmem>>, vector<1x128xf32>
    %c4 = arith.constant 4 : index
    %c0_18 = arith.constant 0 : index
    %37 = vector.load %arg5[%c4, %c0_18] : memref<16x256xf32, #tpu.memory_space<vmem>>, vector<1x128xf32>
    %c5 = arith.constant 5 : index
    %c0_19 = arith.constant 0 : index
    %38 = vector.load %arg5[%c5, %c0_19] : memref<16x256xf32, #tpu.memory_space<vmem>>, vector<1x128xf32>
    %39 = arith.truncf %34 : vector<16x256xf32> to vector<16x256xbf16>
    %cst_20 = arith.constant dense<0.000000e+00> : vector<16x128xf32>
    %40 = tpu.matmul %39, %35, %cst_20 {dimension_numbers = #tpu.dot_dimension_numbers<[1], [0], [0], [1], [0, 0, 1, 1], [], []>} : vector<16x256xbf16>, vector<256x128xbf16>, vector<16x128xf32> -> vector<16x128xf32>
    %41 = vector.broadcast %36 : vector<1x128xf32> to vector<16x128xf32>
    %42 = arith.addf %40, %41 : vector<16x128xf32>
    %cst_21 = arith.constant 0.000000e+00 : f32
    %43 = vector.broadcast %cst_21 : f32 to vector<16x128xf32>
    %44 = arith.cmpf ogt, %42, %43 : vector<16x128xf32>
    %cst_22 = arith.constant 2.000000e-01 : f32
    %45 = vector.broadcast %cst_22 : f32 to vector<16x128xf32>
    %46 = arith.mulf %42, %45 : vector<16x128xf32>
    %47 = arith.select %44, %42, %46 : vector<16x128xi1>, vector<16x128xf32>
    %cst_23 = arith.constant dense<0.000000e+00> : vector<128xf32>
    %48 = vector.multi_reduction <add>, %47, %cst_23 [0] : vector<16x128xf32> to vector<128xf32>
    %49 = vector.shape_cast %48 : vector<128xf32> to vector<1x128xf32>
    %cst_24 = arith.constant 1.600000e+01 : f32
    %50 = vector.broadcast %cst_24 : f32 to vector<1x128xf32>
    %51 = arith.divf %49, %50 : vector<1x128xf32>
    %52 = vector.broadcast %51 : vector<1x128xf32> to vector<16x128xf32>
    %53 = arith.subf %47, %52 : vector<16x128xf32>
    %54 = arith.mulf %53, %53 : vector<16x128xf32>
    %cst_25 = arith.constant dense<0.000000e+00> : vector<128xf32>
    %55 = vector.multi_reduction <add>, %54, %cst_25 [0] : vector<16x128xf32> to vector<128xf32>
    %56 = vector.shape_cast %55 : vector<128xf32> to vector<1x128xf32>
    %cst_26 = arith.constant 1.600000e+01 : f32
    %57 = vector.broadcast %cst_26 : f32 to vector<1x128xf32>
    %58 = arith.divf %56, %57 : vector<1x128xf32>
    %cst_27 = arith.constant 9.99999974E-6 : f32
    %59 = vector.broadcast %cst_27 : f32 to vector<1x128xf32>
    %60 = arith.addf %58, %59 : vector<1x128xf32>
    %61 = math.rsqrt %60 : vector<1x128xf32>
    %62 = arith.mulf %37, %61 : vector<1x128xf32>
    %63 = arith.mulf %51, %62 : vector<1x128xf32>
    %64 = arith.subf %38, %63 : vector<1x128xf32>
    %65 = vector.broadcast %62 : vector<1x128xf32> to vector<16x128xf32>
    %66 = arith.mulf %47, %65 : vector<16x128xf32>
    %67 = vector.broadcast %64 : vector<1x128xf32> to vector<16x128xf32>
    %68 = arith.addf %66, %67 : vector<16x128xf32>
    %c256 = arith.constant 256 : index
    %c0_28 = arith.constant 0 : index
    %69 = vector.load %arg4[%c256, %c0_28] : memref<704x128xbf16, #tpu.memory_space<vmem>>, vector<128x128xbf16>
    %c6 = arith.constant 6 : index
    %c0_29 = arith.constant 0 : index
    %70 = vector.load %arg5[%c6, %c0_29] : memref<16x256xf32, #tpu.memory_space<vmem>>, vector<1x128xf32>
    %71 = arith.truncf %68 : vector<16x128xf32> to vector<16x128xbf16>
    %cst_30 = arith.constant dense<0.000000e+00> : vector<16x128xf32>
    %72 = tpu.matmul %71, %69, %cst_30 {dimension_numbers = #tpu.dot_dimension_numbers<[1], [0], [0], [1], [0, 0, 1, 1], [], []>} : vector<16x128xbf16>, vector<128x128xbf16>, vector<16x128xf32> -> vector<16x128xf32>
    %73 = vector.broadcast %70 : vector<1x128xf32> to vector<16x128xf32>
    %74 = arith.addf %72, %73 : vector<16x128xf32>
    %75 = vector.extract_strided_slice %74 {offsets = [0, 0], sizes = [16, 64], strides = [1, 1]} : vector<16x128xf32> to vector<16x64xf32>
    %76 = vector.extract_strided_slice %74 {offsets = [0, 64], sizes = [16, 64], strides = [1, 1]} : vector<16x128xf32> to vector<16x64xf32>
    %cst_31 = arith.constant 5.000000e-01 : f32
    %77 = vector.broadcast %cst_31 : f32 to vector<16x64xf32>
    %78 = arith.mulf %77, %76 : vector<16x64xf32>
    %79 = math.exp %78 : vector<16x64xf32>
    %c0_32 = arith.constant 0 : index
    %c0_33 = arith.constant 0 : index
    %c0_34 = arith.constant 0 : index
    %80 = vector.load %arg2[%c0_32, %c0_33, %c0_34] : memref<1x16x64xf32, #tpu.memory_space<vmem>>, vector<1x16x64xf32>
    %81 = vector.shape_cast %80 : vector<1x16x64xf32> to vector<16x64xf32>
    %82 = arith.mulf %81, %79 : vector<16x64xf32>
    %83 = arith.addf %75, %82 : vector<16x64xf32>
    %c384 = arith.constant 384 : index
    %c0_35 = arith.constant 0 : index
    %84 = vector.load %arg4[%c384, %c0_35] : memref<704x128xbf16, #tpu.memory_space<vmem>>, vector<64x128xbf16>
    %c7 = arith.constant 7 : index
    %c0_36 = arith.constant 0 : index
    %85 = vector.load %arg5[%c7, %c0_36] : memref<16x256xf32, #tpu.memory_space<vmem>>, vector<1x128xf32>
    %c8 = arith.constant 8 : index
    %c0_37 = arith.constant 0 : index
    %86 = vector.load %arg5[%c8, %c0_37] : memref<16x256xf32, #tpu.memory_space<vmem>>, vector<1x128xf32>
    %c9 = arith.constant 9 : index
    %c0_38 = arith.constant 0 : index
    %87 = vector.load %arg5[%c9, %c0_38] : memref<16x256xf32, #tpu.memory_space<vmem>>, vector<1x128xf32>
    %88 = arith.truncf %83 : vector<16x64xf32> to vector<16x64xbf16>
    %cst_39 = arith.constant dense<0.000000e+00> : vector<16x128xf32>
    %89 = tpu.matmul %88, %84, %cst_39 {dimension_numbers = #tpu.dot_dimension_numbers<[1], [0], [0], [1], [0, 0, 1, 1], [], []>} : vector<16x64xbf16>, vector<64x128xbf16>, vector<16x128xf32> -> vector<16x128xf32>
    %90 = vector.broadcast %85 : vector<1x128xf32> to vector<16x128xf32>
    %91 = arith.addf %89, %90 : vector<16x128xf32>
    %cst_40 = arith.constant 0.000000e+00 : f32
    %92 = vector.broadcast %cst_40 : f32 to vector<16x128xf32>
    %93 = arith.cmpf ogt, %91, %92 : vector<16x128xf32>
    %cst_41 = arith.constant 2.000000e-01 : f32
    %94 = vector.broadcast %cst_41 : f32 to vector<16x128xf32>
    %95 = arith.mulf %91, %94 : vector<16x128xf32>
    %96 = arith.select %93, %91, %95 : vector<16x128xi1>, vector<16x128xf32>
    %cst_42 = arith.constant dense<0.000000e+00> : vector<128xf32>
    %97 = vector.multi_reduction <add>, %96, %cst_42 [0] : vector<16x128xf32> to vector<128xf32>
    %98 = vector.shape_cast %97 : vector<128xf32> to vector<1x128xf32>
    %cst_43 = arith.constant 1.600000e+01 : f32
    %99 = vector.broadcast %cst_43 : f32 to vector<1x128xf32>
    %100 = arith.divf %98, %99 : vector<1x128xf32>
    %101 = vector.broadcast %100 : vector<1x128xf32> to vector<16x128xf32>
    %102 = arith.subf %96, %101 : vector<16x128xf32>
    %103 = arith.mulf %102, %102 : vector<16x128xf32>
    %cst_44 = arith.constant dense<0.000000e+00> : vector<128xf32>
    %104 = vector.multi_reduction <add>, %103, %cst_44 [0] : vector<16x128xf32> to vector<128xf32>
    %105 = vector.shape_cast %104 : vector<128xf32> to vector<1x128xf32>
    %cst_45 = arith.constant 1.600000e+01 : f32
    %106 = vector.broadcast %cst_45 : f32 to vector<1x128xf32>
    %107 = arith.divf %105, %106 : vector<1x128xf32>
    %cst_46 = arith.constant 9.99999974E-6 : f32
    %108 = vector.broadcast %cst_46 : f32 to vector<1x128xf32>
    %109 = arith.addf %107, %108 : vector<1x128xf32>
    %110 = math.rsqrt %109 : vector<1x128xf32>
    %111 = arith.mulf %86, %110 : vector<1x128xf32>
    %112 = arith.mulf %100, %111 : vector<1x128xf32>
    %113 = arith.subf %87, %112 : vector<1x128xf32>
    %114 = vector.broadcast %111 : vector<1x128xf32> to vector<16x128xf32>
    %115 = arith.mulf %96, %114 : vector<16x128xf32>
    %116 = vector.broadcast %113 : vector<1x128xf32> to vector<16x128xf32>
    %117 = arith.addf %115, %116 : vector<16x128xf32>
    %c128 = arith.constant 128 : index
    %c0_47 = arith.constant 0 : index
    %118 = vector.load %arg3[%c128, %c0_47] : memref<256x256xbf16, #tpu.memory_space<vmem>>, vector<128x256xbf16>
    %c10 = arith.constant 10 : index
    %c0_48 = arith.constant 0 : index
    %119 = vector.load %arg5[%c10, %c0_48] : memref<16x256xf32, #tpu.memory_space<vmem>>, vector<1x256xf32>
    %c11 = arith.constant 11 : index
    %c0_49 = arith.constant 0 : index
    %120 = vector.load %arg5[%c11, %c0_49] : memref<16x256xf32, #tpu.memory_space<vmem>>, vector<1x256xf32>
    %c12 = arith.constant 12 : index
    %c0_50 = arith.constant 0 : index
    %121 = vector.load %arg5[%c12, %c0_50] : memref<16x256xf32, #tpu.memory_space<vmem>>, vector<1x256xf32>
    %122 = arith.truncf %117 : vector<16x128xf32> to vector<16x128xbf16>
    %cst_51 = arith.constant dense<0.000000e+00> : vector<16x256xf32>
    %123 = tpu.matmul %122, %118, %cst_51 {dimension_numbers = #tpu.dot_dimension_numbers<[1], [0], [0], [1], [0, 0, 1, 1], [], []>} : vector<16x128xbf16>, vector<128x256xbf16>, vector<16x256xf32> -> vector<16x256xf32>
    %124 = vector.broadcast %119 : vector<1x256xf32> to vector<16x256xf32>
    %125 = arith.addf %123, %124 : vector<16x256xf32>
    %cst_52 = arith.constant 0.000000e+00 : f32
    %126 = vector.broadcast %cst_52 : f32 to vector<16x256xf32>
    %127 = arith.cmpf ogt, %125, %126 : vector<16x256xf32>
    %cst_53 = arith.constant 2.000000e-01 : f32
    %128 = vector.broadcast %cst_53 : f32 to vector<16x256xf32>
    %129 = arith.mulf %125, %128 : vector<16x256xf32>
    %130 = arith.select %127, %125, %129 : vector<16x256xi1>, vector<16x256xf32>
    %cst_54 = arith.constant dense<0.000000e+00> : vector<256xf32>
    %131 = vector.multi_reduction <add>, %130, %cst_54 [0] : vector<16x256xf32> to vector<256xf32>
    %132 = vector.shape_cast %131 : vector<256xf32> to vector<1x256xf32>
    %cst_55 = arith.constant 1.600000e+01 : f32
    %133 = vector.broadcast %cst_55 : f32 to vector<1x256xf32>
    %134 = arith.divf %132, %133 : vector<1x256xf32>
    %135 = vector.broadcast %134 : vector<1x256xf32> to vector<16x256xf32>
    %136 = arith.subf %130, %135 : vector<16x256xf32>
    %137 = arith.mulf %136, %136 : vector<16x256xf32>
    %cst_56 = arith.constant dense<0.000000e+00> : vector<256xf32>
    %138 = vector.multi_reduction <add>, %137, %cst_56 [0] : vector<16x256xf32> to vector<256xf32>
    %139 = vector.shape_cast %138 : vector<256xf32> to vector<1x256xf32>
    %cst_57 = arith.constant 1.600000e+01 : f32
    %140 = vector.broadcast %cst_57 : f32 to vector<1x256xf32>
    %141 = arith.divf %139, %140 : vector<1x256xf32>
    %cst_58 = arith.constant 9.99999974E-6 : f32
    %142 = vector.broadcast %cst_58 : f32 to vector<1x256xf32>
    %143 = arith.addf %141, %142 : vector<1x256xf32>
    %144 = math.rsqrt %143 : vector<1x256xf32>
    %145 = arith.mulf %120, %144 : vector<1x256xf32>
    %146 = arith.mulf %134, %145 : vector<1x256xf32>
    %147 = arith.subf %121, %146 : vector<1x256xf32>
    %148 = vector.broadcast %145 : vector<1x256xf32> to vector<16x256xf32>
    %149 = arith.mulf %130, %148 : vector<16x256xf32>
    %150 = vector.broadcast %147 : vector<1x256xf32> to vector<16x256xf32>
    %151 = arith.addf %149, %150 : vector<16x256xf32>
    %c448 = arith.constant 448 : index
    %c0_59 = arith.constant 0 : index
    %152 = vector.load %arg4[%c448, %c0_59] : memref<704x128xbf16, #tpu.memory_space<vmem>>, vector<256x128xbf16>
    %c13 = arith.constant 13 : index
    %c0_60 = arith.constant 0 : index
    %153 = vector.load %arg5[%c13, %c0_60] : memref<16x256xf32, #tpu.memory_space<vmem>>, vector<1x128xf32>
    %154 = arith.truncf %151 : vector<16x256xf32> to vector<16x256xbf16>
    %cst_61 = arith.constant dense<0.000000e+00> : vector<16x128xf32>
    %155 = tpu.matmul %154, %152, %cst_61 {dimension_numbers = #tpu.dot_dimension_numbers<[1], [0], [0], [1], [0, 0, 1, 1], [], []>} : vector<16x256xbf16>, vector<256x128xbf16>, vector<16x128xf32> -> vector<16x128xf32>
    %156 = vector.broadcast %153 : vector<1x128xf32> to vector<16x128xf32>
    %157 = arith.addf %155, %156 : vector<16x128xf32>
    %c0_62 = arith.constant 0 : index
    %c0_63 = arith.constant 0 : index
    %c0_64 = arith.constant 0 : index
    %158 = vector.load %arg6[%c0_62, %c0_63, %c0_64] : memref<1x16x128xf32, #tpu.memory_space<vmem>>, vector<1x16x128xf32>
    %159 = vector.shape_cast %158 : vector<1x16x128xf32> to vector<16x128xf32>
    %160 = vector.shape_cast %157 : vector<16x128xf32> to vector<1x16x128xf32>
    tpu.vector_store %arg6[%c0_62, %c0_63, %c0_64], %160 {strides = array<i32>} : memref<1x16x128xf32, #tpu.memory_space<vmem>>, vector<1x16x128xf32>,
    %c0_65 = arith.constant 0 : index
    %c0_66 = arith.constant 0 : index
    %c0_67 = arith.constant 0 : index
    %161 = vector.load %arg7[%c0_65, %c0_66, %c0_67] : memref<1x16x128xf32, #tpu.memory_space<vmem>>, vector<1x16x128xf32>
    %162 = vector.shape_cast %161 : vector<1x16x128xf32> to vector<16x128xf32>
    %163 = vector.shape_cast %74 : vector<16x128xf32> to vector<1x16x128xf32>
    tpu.vector_store %arg7[%c0_65, %c0_66, %c0_67], %163 {strides = array<i32>} : memref<1x16x128xf32, #tpu.memory_space<vmem>>, vector<1x16x128xf32>,
    return
  }
  func.func @transform_0(%arg0: i32) -> (i32, i32, i32) {
    %c0_i32 = arith.constant 0 : i32
    %c0_i32_0 = arith.constant 0 : i32
    %c0_i32_1 = arith.constant 0 : i32
    return %arg0, %c0_i32, %c0_i32_0 : i32, i32, i32
  }
  func.func @transform_1(%arg0: i32) -> (i32, i32, i32) {
    %c0_i32 = arith.constant 0 : i32
    %c0_i32_0 = arith.constant 0 : i32
    %c0_i32_1 = arith.constant 0 : i32
    return %arg0, %c0_i32, %c0_i32_0 : i32, i32, i32
  }
  func.func @transform_2(%arg0: i32) -> (i32, i32) {
    %c0_i32 = arith.constant 0 : i32
    %c0_i32_0 = arith.constant 0 : i32
    %c0_i32_1 = arith.constant 0 : i32
    return %c0_i32, %c0_i32_0 : i32, i32
  }
  func.func @transform_3(%arg0: i32) -> (i32, i32) {
    %c0_i32 = arith.constant 0 : i32
    %c0_i32_0 = arith.constant 0 : i32
    %c0_i32_1 = arith.constant 0 : i32
    return %c0_i32, %c0_i32_0 : i32, i32
  }
  func.func @transform_4(%arg0: i32) -> (i32, i32) {
    %c0_i32 = arith.constant 0 : i32
    %c0_i32_0 = arith.constant 0 : i32
    %c0_i32_1 = arith.constant 0 : i32
    return %c0_i32, %c0_i32_0 : i32, i32
  }
  func.func @transform_5(%arg0: i32) -> (i32, i32, i32) {
    %c0_i32 = arith.constant 0 : i32
    %c0_i32_0 = arith.constant 0 : i32
    %c0_i32_1 = arith.constant 0 : i32
    return %arg0, %c0_i32, %c0_i32_0 : i32, i32, i32
  }
  func.func @transform_6(%arg0: i32) -> (i32, i32, i32) {
    %c0_i32 = arith.constant 0 : i32
    %c0_i32_0 = arith.constant 0 : i32
    %c0_i32_1 = arith.constant 0 : i32
    return %arg0, %c0_i32, %c0_i32_0 : i32, i32, i32
  }
}

</mosaic_0001>

<llo_original>
// kernel: tabular_vae_forward.1
$region0: #{tabular_vae_forward.1}
  #allocation0 [shape = 'u32[]', space=smem, size = 0x4, offset = 0x4, fixed_abs, tag = 'smem constant byte address 0x4 - core index']
  #allocation1 [shape = 'u32[144,128]{1,0:T(1,128)}', space=vmem, size = 0x12000, scoped, tag = 'internal scratch']
  %s0 = inlined_call_operand.vmem [shape: bf16[4,16,128], index: 0, kind: input, shape index: {}]
  %s1 = inlined_call_operand.vmem [shape: f32[4,16,64], index: 1, kind: input, shape index: {}]
  %s2 = inlined_call_operand.hbm [shape: bf16[256,256], index: 2, kind: input, shape index: {}]
  %s3 = inlined_call_operand.hbm [shape: bf16[704,128], index: 3, kind: input, shape index: {}]
  %s4 = inlined_call_operand.vmem [shape: f32[16,256], index: 4, kind: input, shape index: {}]
  %s5 = inlined_call_operand.hbm [shape: f32[4,16,128], index: 5, kind: output, shape index: {0}]
  %s6 = inlined_call_operand.vmem [shape: f32[4,16,128], index: 6, kind: output, shape index: {1}]
  %7 = xla_tuple %s5, %s6
  %s8 = sld [smem:[#allocation0]]
  $region69: #{tabular_vae_forward.1} parent=0
    _
  %s10 = ssub.s32 1, %s8
  %s11 = scalar_select 0, %s10, %s8
  $region1: #{tabular_vae_forward.1} parent=0
    #allocation2 [shape = 'u8[131072]{0}', space=vmem, size = 0x20000, scoped, tag = 'input window, operand 2, single buffered']
    #allocation3 [shape = 's32[2]{0}', space=sflag, size = 0x8, scoped, tag = 'scoped memory for tabular_vae_forward.1']
    #allocation4 [shape = 's32[2]{0}', space=sflag, size = 0x8, scoped, tag = 'scoped memory for tabular_vae_forward.1']
    #allocation5 [shape = 'u8[180224]{0}', space=vmem, size = 0x2c000, scoped, tag = 'input window, operand 3, single buffered']
    #allocation6 [shape = 's32[1]{0}', space=sflag, size = 0x4, scoped, tag = 'scoped memory for tabular_vae_forward.1']
    #allocation7 [shape = 'u8[16384]{0}', space=vmem, size = 0x4000, scoped, tag = 'output window, operand 0']
    %12 = vsyncpa [#allocation3], 0
    %13 = vsyncpa [#allocation6], 0
    %14 = vsyncpa [#allocation4], 0
    %s15 = scalar_lea.sflag [#allocation4], 1
    %16 = vsyncpa %s15, 0
    loop: start=0, step=1, limit=6
    $region2: #{tabular_vae_forward.1} parent=1 // loop_pre_header
      _
    $region3: #{tabular_vae_forward.1} parent=1 // loop_header
      %s18 = sphi 0, %s22
      %p19 = scmp.ge.s32.totalorder %s18, 6
      %s28 = sphi 0, %s30
      %s31 = sphi 0, %s28
      %s32 = sphi 0, %s31
      %s48 = sphi 0, %s32
      %s54 = sphi 0, %s56
      %s57 = sphi 0, %s54
      %s58 = sphi 0, %s57
      %s74 = sphi 0, %s58
      %s78 = sphi 0, %s78
      %s80 = sphi 0, %s78
      %s81 = sphi 0, %s80
      %s95 = sphi 0, %s81
      %s99 = sphi 0, %s99
      %s101 = sphi 0, %s99
      %s102 = sphi 0, %s101
      %s116 = sphi 0, %s102
      %s120 = sphi 0, %s120
      %s122 = sphi 0, %s120
      %s123 = sphi 0, %s122
      %s137 = sphi 0, %s123
      %s143 = sphi 0, %s145
      %s146 = sphi 0, %s143
      %s147 = sphi 0, %s146
      %s163 = sphi 0, %s147
      %s169 = sphi 0, %s171
      %s172 = sphi 0, %s169
      %s173 = sphi 0, %s172
      %s189 = sphi 0, %s173
    $region4: #{tabular_vae_forward.1} parent=1 // loop_header_branch
      %21 = sbr.rel (%p19) target = $region8
    $region5: #{tabular_vae_forward.1} parent=1 // loop_body
      %s23 = ssub.s32 %s18, 1
      %s24 = ssub.s32 %s18, 2
      %s25 = sadd.s32 %s18, 1
      %s26 = ssub.s32 %s18, %s25
      %p27 = scmp.eq.s32.totalorder %s26, 0
      %s29 = sadd.s32 %s28, 1
      %s30 = scalar_select %p27, %s28, %s29
      %p33 = pneg %p27
      %p34 = scmp.eq.s32.totalorder %s18, 3
      %p35 = por %p33, %p34
      %p36 = scmp.ne.s32.totalorder %s28, %s31
      %p37 = scmp.eq.s32.totalorder %s18, 0
      %p38 = por %p36, %p37
      %p39 = scmp.ne.s32.totalorder %s28, %s31
      %p40 = scmp.eq.s32.totalorder %s23, 3
      %p41 = por %p39, %p40
      %p42 = scmp.ne.s32.totalorder %s31, %s32
      %p43 = scmp.eq.s32.totalorder %s23, 0
      %p44 = por %p42, %p43
      %p45 = scmp.ne.s32.totalorder %s31, %s32
      %p46 = scmp.eq.s32.totalorder %s24, 3
      %p47 = por %p45, %p46
      %p49 = scmp.ne.s32.totalorder %s32, %s48
      %p50 = scmp.eq.s32.totalorder %s24, 0
      %p51 = por %p49, %p50
      %s52 = ssub.s32 %s18, %s25
      %p53 = scmp.eq.s32.totalorder %s52, 0
      %s55 = sadd.s32 %s54, 1
      %s56 = scalar_select %p53, %s54, %s55
      %p59 = pneg %p53
      %p60 = scmp.eq.s32.totalorder %s18, 3
      %p61 = por %p59, %p60
      %p62 = scmp.ne.s32.totalorder %s54, %s57
      %p63 = scmp.eq.s32.totalorder %s18, 0
      %p64 = por %p62, %p63
      %p65 = scmp.ne.s32.totalorder %s54, %s57
      %p66 = scmp.eq.s32.totalorder %s23, 3
      %p67 = por %p65, %p66
      %p68 = scmp.ne.s32.totalorder %s57, %s58
      %p69 = scmp.eq.s32.totalorder %s23, 0
      %p70 = por %p68, %p69
      %p71 = scmp.ne.s32.totalorder %s57, %s58
      %p72 = scmp.eq.s32.totalorder %s24, 3
      %p73 = por %p71, %p72
      %p75 = scmp.ne.s32.totalorder %s58, %s74
      %p76 = scmp.eq.s32.totalorder %s24, 0
      %p77 = por %p75, %p76
      %s79 = sadd.s32 %s78, 1
      %p82 = scmp.eq.s32.totalorder %s18, 3
      %p83 = scmp.ne.s32.totalorder %s78, %s80
      %p84 = scmp.eq.s32.totalorder %s18, 0
      %p85 = por %p83, %p84
      %p86 = scmp.ne.s32.totalorder %s78, %s80
      %p87 = scmp.eq.s32.totalorder %s23, 3
      %p88 = por %p86, %p87
      %p89 = scmp.ne.s32.totalorder %s80, %s81
      %p90 = scmp.eq.s32.totalorder %s23, 0
      %p91 = por %p89, %p90
      %p92 = scmp.ne.s32.totalorder %s80, %s81
      %p93 = scmp.eq.s32.totalorder %s24, 3
      %p94 = por %p92, %p93
      %p96 = scmp.ne.s32.totalorder %s81, %s95
      %p97 = scmp.eq.s32.totalorder %s24, 0
      %p98 = por %p96, %p97
      %s100 = sadd.s32 %s99, 1
      %p103 = scmp.eq.s32.totalorder %s18, 3
      %p104 = scmp.ne.s32.totalorder %s99, %s101
      %p105 = scmp.eq.s32.totalorder %s18, 0
      %p106 = por %p104, %p105
      %p107 = scmp.ne.s32.totalorder %s99, %s101
      %p108 = scmp.eq.s32.totalorder %s23, 3
      %p109 = por %p107, %p108
      %p110 = scmp.ne.s32.totalorder %s101, %s102
      %p111 = scmp.eq.s32.totalorder %s23, 0
      %p112 = por %p110, %p111
      %p113 = scmp.ne.s32.totalorder %s101, %s102
      %p114 = scmp.eq.s32.totalorder %s24, 3
      %p115 = por %p113, %p114
      %p117 = scmp.ne.s32.totalorder %s102, %s116
      %p118 = scmp.eq.s32.totalorder %s24, 0
      %p119 = por %p117, %p118
      %s121 = sadd.s32 %s120, 1
      %p124 = scmp.eq.s32.totalorder %s18, 3
      %p125 = scmp.ne.s32.totalorder %s120, %s122
      %p126 = scmp.eq.s32.totalorder %s18, 0
      %p127 = por %p125, %p126
      %p128 = scmp.ne.s32.totalorder %s120, %s122
      %p129 = scmp.eq.s32.totalorder %s23, 3
      %p130 = por %p128, %p129
      %p131 = scmp.ne.s32.totalorder %s122, %s123
      %p132 = scmp.eq.s32.totalorder %s23, 0
      %p133 = por %p131, %p132
      %p134 = scmp.ne.s32.totalorder %s122, %s123
      %p135 = scmp.eq.s32.totalorder %s24, 3
      %p136 = por %p134, %p135
      %p138 = scmp.ne.s32.totalorder %s123, %s137
      %p139 = scmp.eq.s32.totalorder %s24, 0
      %p140 = por %p138, %p139
      %s141 = ssub.s32 %s18, %s25
      %p142 = scmp.eq.s32.totalorder %s141, 0
      %s144 = sadd.s32 %s143, 1
      %s145 = scalar_select %p142, %s143, %s144
      %p148 = pneg %p142
      %p149 = scmp.eq.s32.totalorder %s18, 3
      %p150 = por %p148, %p149
      %p151 = scmp.ne.s32.totalorder %s143, %s146
      %p152 = scmp.eq.s32.totalorder %s18, 0
      %p153 = por %p151, %p152
      %p154 = scmp.ne.s32.totalorder %s143, %s146
      %p155 = scmp.eq.s32.totalorder %s23, 3
      %p156 = por %p154, %p155
      %p157 = scmp.ne.s32.totalorder %s146, %s147
      %p158 = scmp.eq.s32.totalorder %s23, 0
      %p159 = por %p157, %p158
      %p160 = scmp.ne.s32.totalorder %s146, %s147
      %p161 = scmp.eq.s32.totalorder %s24, 3
      %p162 = por %p160, %p161
      %p164 = scmp.ne.s32.totalorder %s147, %s163
      %p165 = scmp.eq.s32.totalorder %s24, 0
      %p166 = por %p164, %p165
      %s167 = ssub.s32 %s18, %s25
      %p168 = scmp.eq.s32.totalorder %s167, 0
      %s170 = sadd.s32 %s169, 1
      %s171 = scalar_select %p168, %s169, %s170
      %p174 = pneg %p168
      %p175 = scmp.eq.s32.totalorder %s18, 3
      %p176 = por %p174, %p175
      %p177 = scmp.ne.s32.totalorder %s169, %s172
      %p178 = scmp.eq.s32.totalorder %s18, 0
      %p179 = por %p177, %p178
      %p180 = scmp.ne.s32.totalorder %s169, %s172
      %p181 = scmp.eq.s32.totalorder %s23, 3
      %p182 = por %p180, %p181
      %p183 = scmp.ne.s32.totalorder %s172, %s173
      %p184 = scmp.eq.s32.totalorder %s23, 0
      %p185 = por %p183, %p184
      %p186 = scmp.ne.s32.totalorder %s172, %s173
      %p187 = scmp.eq.s32.totalorder %s24, 3
      %p188 = por %p186, %p187
      %p190 = scmp.ne.s32.totalorder %s173, %s189
      %p191 = scmp.eq.s32.totalorder %s24, 0
      %p192 = por %p190, %p191
      %p193 = scmp.le.s32.totalorder 1, %s18
      %p194 = scmp.lt.s32.totalorder %s18, 5
      %p195 = pnand %p193, %p194
      %p196 = pneg %p195
      // Predicated region
      $region9: #{tabular_vae_forward.1} parent=5 // pred_check
        _
      $region10: #{tabular_vae_forward.1} parent=5 // pred_check_branch
        %198 = sbr.rel (%p195) target = $region12
      $region11: #{tabular_vae_forward.1} parent=5 // pred_region
        %s199 = ssub.s32 %s18, 1
        // Predicated region
        $region13: #{tabular_vae_forward.1} parent=11 // pred_check
          %p200 = pneg %p91
        $region14: #{tabular_vae_forward.1} parent=11 // pred_check_branch
          %202 = sbr.rel (%p200) target = $region16
        $region15: #{tabular_vae_forward.1} parent=11 // pred_region
          %s204 = ssub.s32 4096, 4096
          %205 = vsyncadd [#allocation3], %s204
          %s206 = sshll.u32 [#allocation2], 4
          %s207 = int_to_ptr.vmem [resolvable:$true] %s206
          %212 = dma.hbm_to_vmem [thread:$0]  %s2, 4096, %s207, [#allocation3], 128, 128, 8
        $region16: #{tabular_vae_forward.1} parent=11 // pred_fallthru
          _
        // Predicated region
        $region17: #{tabular_vae_forward.1} parent=11 // pred_check
          %p213 = pneg %p112
        $region18: #{tabular_vae_forward.1} parent=11 // pred_check_branch
          %215 = sbr.rel (%p213) target = $region20
        $region19: #{tabular_vae_forward.1} parent=11 // pred_region
          %s217 = ssub.s32 5632, 5632
          %218 = vsyncadd [#allocation6], %s217
          %s219 = sshll.u32 [#allocation5], 4
          %s220 = int_to_ptr.vmem [resolvable:$true] %s219
          %225 = dma.hbm_to_vmem [thread:$0]  %s3, 5632, %s220, [#allocation6], 64, 64, 4
        $region20: #{tabular_vae_forward.1} parent=11 // pred_fallthru
          _
        // Predicated region
        $region21: #{tabular_vae_forward.1} parent=11 // pred_check
          %p226 = pneg %p133
        $region22: #{tabular_vae_forward.1} parent=11 // pred_check_branch
          %228 = sbr.rel (%p226) target = $region24
        $region23: #{tabular_vae_forward.1} parent=11 // pred_region
          _
        $region24: #{tabular_vae_forward.1} parent=11 // pred_fallthru
          _
      $region12: #{tabular_vae_forward.1} parent=5 // pred_fallthru
        _
      %p229 = scmp.lt.s32.totalorder %s18, 4
      // Predicated region
      $region25: #{tabular_vae_forward.1} parent=5 // pred_check
        %p230 = pneg %p229
      $region26: #{tabular_vae_forward.1} parent=5 // pred_check_branch
        %232 = sbr.rel (%p230) target = $region28
      $region27: #{tabular_vae_forward.1} parent=5 // pred_region
        // Predicated region
        $region29: #{tabular_vae_forward.1} parent=27 // pred_check
          %p233 = pneg %p38
        $region30: #{tabular_vae_forward.1} parent=27 // pred_check_branch
          %235 = sbr.rel (%p233) target = $region32
        $region31: #{tabular_vae_forward.1} parent=27 // pred_region
          %p236 = scmp.lt.s32.totalorder %s18, 3
          %s237 = scalar_select %p236, %s18, 3
          %s238 = smul.addr %s237, 2
          %s239 = smul.addr %s238, 4
          %s240 = scalar_lea.vmem %s0, %s239
        $region32: #{tabular_vae_forward.1} parent=27 // pred_fallthru
          _
        // Predicated region
        $region33: #{tabular_vae_forward.1} parent=27 // pred_check
          %p241 = pneg %p64
        $region34: #{tabular_vae_forward.1} parent=27 // pred_check_branch
          %243 = sbr.rel (%p241) target = $region36
        $region35: #{tabular_vae_forward.1} parent=27 // pred_region
          %p244 = scmp.lt.s32.totalorder %s18, 3
          %s245 = scalar_select %p244, %s18, 3
          %s246 = smul.addr %s245, 2
          %s247 = smul.addr %s246, 8
          %s248 = scalar_lea.vmem %s1, %s247
        $region36: #{tabular_vae_forward.1} parent=27 // pred_fallthru
          _
      $region28: #{tabular_vae_forward.1} parent=5 // pred_fallthru
        _
      %p249 = scmp.le.s32.totalorder 1, %s18
      %p250 = scmp.lt.s32.totalorder %s18, 5
      %p251 = pnand %p249, %p250
      %p252 = pneg %p251
      // Predicated region
      $region37: #{tabular_vae_forward.1} parent=5 // pred_check
        _
      $region38: #{tabular_vae_forward.1} parent=5 // pred_check_branch
        %254 = sbr.rel (%p251) target = $region40
      $region39: #{tabular_vae_forward.1} parent=5 // pred_region
        %s255 = ssub.s32 %s18, 1
        // Predicated region
        $region41: #{tabular_vae_forward.1} parent=39 // pred_check
          %p256 = pneg %p91
        $region42: #{tabular_vae_forward.1} parent=39 // pred_check_branch
          %258 = sbr.rel (%p256) target = $region44
        $region43: #{tabular_vae_forward.1} parent=39 // pred_region
          %259 = dma.done [#allocation3], 4096
        $region44: #{tabular_vae_forward.1} parent=39 // pred_fallthru
          _
        // Predicated region
        $region45: #{tabular_vae_forward.1} parent=39 // pred_check
          %p260 = pneg %p112
        $region46: #{tabular_vae_forward.1} parent=39 // pred_check_branch
          %262 = sbr.rel (%p260) target = $region48
        $region47: #{tabular_vae_forward.1} parent=39 // pred_region
          %263 = dma.done [#allocation6], 5632
        $region48: #{tabular_vae_forward.1} parent=39 // pred_fallthru
          _
        %p264 = scmp.lt.s32.totalorder %s23, 3
        %s265 = scalar_select %p264, %s23, 3
        %s266 = smul.addr %s265, 2
        %s267 = smul.addr %s266, 4
        %s268 = scalar_lea.vmem %s0, %s267
        %p269 = pneg %p44
        %p270 = pneg %p41
        %p271 = scmp.lt.s32.totalorder %s23, 3
        %s272 = scalar_select %p271, %s23, 3
        %s273 = smul.addr %s272, 2
        %s274 = smul.addr %s273, 8
        %s275 = scalar_lea.vmem %s1, %s274
        %p276 = pneg %p70
        %p277 = pneg %p67
        %p278 = pneg %p91
        %p279 = pneg %p88
        %p280 = pneg %p112
        %p281 = pneg %p109
        %p282 = pneg %p133
        %p283 = pneg %p130
        %p284 = pneg %p159
        %p285 = pneg %p156
        %s286 = sand.u32 %s146, 1
        %s287 = scalar_lea.sflag [#allocation4], %s286
        %s288 = sand.u32 %s146, 1
        %s289 = smul.addr %s288, 16
        %s290 = scalar_lea.vmem [#allocation7], %s289
        %p291 = pneg %p185
        %p292 = pneg %p182
        %p293 = scmp.lt.s32.totalorder %s23, 3
        %s294 = scalar_select %p293, %s23, 3
        %s295 = smul.addr %s294, 2
        %s296 = smul.addr %s295, 8
        %s297 = scalar_lea.vmem %s6, %s296
        %p298 = scmp.lt.s32.totalorder %s23, 3
        %s299 = scalar_select %p298, %s23, 3
        %s300 = smul.addr %s299, 2
        %s301 = smul.addr %s300, 4
        %s302 = scalar_lea.vmem %s0, %s301
        %p303 = scmp.lt.s32.totalorder %s23, 3
        %s304 = scalar_select %p303, %s23, 3
        %s305 = smul.addr %s304, 2
        %s306 = smul.addr %s305, 8
        %s307 = scalar_lea.vmem %s1, %s306
        %p308 = scmp.lt.s32.totalorder %s23, 3
        %s309 = scalar_select %p308, %s23, 3
        %s310 = smul.addr %s309, 2
        %s311 = smul.addr %s310, 8
        %s312 = scalar_lea.vmem %s6, %s311
        %v314 = vld [vmem:[%s302] sm:$0xf]
        %v315 = vld [vmem:[%s302 + $0x4] sm:$0xf]
        %v316 = vld [vmem:[#allocation2] sm:$0xff]
        %v317 = vld [vmem:[#allocation2 + $0x8] sm:$0xff]
        %v318 = vld [vmem:[#allocation2 + $0x10] sm:$0xff]
        %v319 = vld [vmem:[#allocation2 + $0x18] sm:$0xff]
        %v320 = vld [vmem:[#allocation2 + $0x20] sm:$0xff]
        %v321 = vld [vmem:[#allocation2 + $0x28] sm:$0xff]
        %v322 = vld [vmem:[#allocation2 + $0x30] sm:$0xff]
        %v323 = vld [vmem:[#allocation2 + $0x38] sm:$0xff]
        %v324 = vld [vmem:[#allocation2 + $0x40] sm:$0xff]
        %v325 = vld [vmem:[#allocation2 + $0x48] sm:$0xff]
        %v326 = vld [vmem:[#allocation2 + $0x50] sm:$0xff]
        %v327 = vld [vmem:[#allocation2 + $0x58] sm:$0xff]
        %v328 = vld [vmem:[#allocation2 + $0x60] sm:$0xff]
        %v329 = vld [vmem:[#allocation2 + $0x68] sm:$0xff]
        %v330 = vld [vmem:[#allocation2 + $0x70] sm:$0xff]
        %v331 = vld [vmem:[#allocation2 + $0x78] sm:$0xff]
        %v332 = vld [vmem:[%s4] ss:$8 sm:$0x3]
        %s333 = scalar_lea.vmem %s4, 1
        %v334 = vld [vmem:[%s333] ss:$8 sm:$0x3]
        %s335 = scalar_lea.vmem %s4, 2
        %v336 = vld [vmem:[%s335] ss:$8 sm:$0x3]
        %v338 = vlaneseq
        %v339 = vshrl.u32 %v338, 7
        %v340 = vsub.s32 0, %v339
        %v341 = vrot.slane %v332, %v340
        %v342 = vlaneseq
        %v343 = vshrl.u32 %v342, 7
        %v344 = vsub.s32 1, %v343
        %v345 = vrot.slane %v332, %v344
        %v350 = vunpack.c.l.b16 %v314
        %v351 = vunpack.c.l.b16 %v315
        %v352 = vpack.c.b16 %v351, %v350
        %v370 = vunpack.c.l.b16 %v316
        %v371 = vunpack.c.h.b16 %v316
        %v372 = vunpack.c.l.b16 %v317
        %v373 = vunpack.c.h.b16 %v317
        %v374 = vunpack.c.l.b16 %v318
        %v375 = vunpack.c.h.b16 %v318
        %v376 = vunpack.c.l.b16 %v319
        %v377 = vunpack.c.h.b16 %v319
        %v378 = vunpack.c.l.b16 %v320
        %v379 = vunpack.c.h.b16 %v320
        %v380 = vunpack.c.l.b16 %v321
        %v381 = vunpack.c.h.b16 %v321
        %v382 = vunpack.c.l.b16 %v322
        %v383 = vunpack.c.h.b16 %v322
        %v384 = vunpack.c.l.b16 %v323
        %v385 = vunpack.c.h.b16 %v323
        %v386 = vunpack.c.l.b16 %v324
        %v387 = vunpack.c.h.b16 %v324
        %v388 = vunpack.c.l.b16 %v325
        %v389 = vunpack.c.h.b16 %v325
        %v390 = vunpack.c.l.b16 %v326
        %v391 = vunpack.c.h.b16 %v326
        %v392 = vunpack.c.l.b16 %v327
        %v393 = vunpack.c.h.b16 %v327
        %v394 = vunpack.c.l.b16 %v328
        %v395 = vunpack.c.h.b16 %v328
        %v396 = vunpack.c.l.b16 %v329
        %v397 = vunpack.c.h.b16 %v329
        %v398 = vunpack.c.l.b16 %v330
        %v399 = vunpack.c.h.b16 %v330
        %v400 = vunpack.c.l.b16 %v331
        %v401 = vunpack.c.h.b16 %v331
        %v402 = vpack.c.b16 %v372, %v370
        %v403 = vpack.c.b16 %v373, %v371
        %v404 = vpack.c.b16 %v376, %v374
        %v405 = vpack.c.b16 %v377, %v375
        %v406 = vpack.c.b16 %v380, %v378
        %v407 = vpack.c.b16 %v381, %v379
        %v408 = vpack.c.b16 %v384, %v382
        %v409 = vpack.c.b16 %v385, %v383
        %v410 = vpack.c.b16 %v388, %v386
        %v411 = vpack.c.b16 %v389, %v387
        %v412 = vpack.c.b16 %v392, %v390
        %v413 = vpack.c.b16 %v393, %v391
        %v414 = vpack.c.b16 %v396, %v394
        %v415 = vpack.c.b16 %v397, %v395
        %v416 = vpack.c.b16 %v400, %v398
        %v417 = vpack.c.b16 %v401, %v399
        %434 = vmatprep.subr.bf16.mxu0 %v417
        %435 = vmatpush1.bf16.msra.mxu0 %v416
        %436 = vmatprep.subr.bf16.mxu0 %v415
        %437 = vmatpush1.bf16.msra.mxu0 %v414
        %438 = vmatprep.subr.bf16.mxu0 %v413
        %439 = vmatpush1.bf16.msra.mxu0 %v412
        %440 = vmatprep.subr.bf16.mxu0 %v411
        %441 = vmatpush1.bf16.msra.mxu0 %v410
        %442 = vmatprep.subr.bf16.mxu0 %v409
        %443 = vmatpush1.bf16.msra.mxu0 %v408
        %444 = vmatprep.subr.bf16.mxu0 %v407
        %445 = vmatpush1.bf16.msra.mxu0 %v406
        %446 = vmatprep.subr.bf16.mxu0 %v405
        %447 = vmatpush1.bf16.msra.mxu0 %v404
        %448 = vmatprep.subr.bf16.mxu0 %v403
        %449 = vmatpush1.bf16.msra.mxu0 %v402
        %450 = vmatprep.subr.bf16.mxu0 0
        %451 = vmatpush2.bf16.msra.mxu0 0
        %452 = vmatprep.subr.bf16.mxu0 0
        %453 = vmatpush2.bf16.msra.mxu0 0
        %454 = vmatprep.subr.bf16.mxu0 0
        %455 = vmatpush2.bf16.msra.mxu0 0
        %456 = vmatprep.subr.bf16.mxu0 0
        %457 = vmatpush2.bf16.msra.mxu0 0
        %458 = vmatprep.subr.bf16.mxu0 0
        %459 = vmatpush2.bf16.msra.mxu0 0
        %460 = vmatprep.subr.bf16.mxu0 0
        %461 = vmatpush2.bf16.msra.mxu0 0
        %462 = vmatprep.subr.bf16.mxu0 0
        %463 = vmatpush2.bf16.msra.mxu0 0
        %464 = vmatprep.subr.bf16.mxu0 0
        %465 = vmatpush2.bf16.msra.mxu0 0
        %466 = vmatprep.mubr.bf16.mxu0 0
        %467 = vmatmul.mubr.bf16.gmra.mxu0 %v352
        %v468 = vpop.f32.mrf.mxu0
        %v469 = vadd.f32 %v341, %v468
        %v470 = vpop.f32.mrf.mxu0
        %v471 = vadd.f32 %v345, %v470
        %v472 = vpop.f32.mrf.mxu0
        %v473 = vadd.f32 %v341, %v472
        %v474 = vpop.f32.mrf.mxu0
        %v475 = vadd.f32 %v345, %v474
        %476 = vdwg.mxu0
        %vm477 = vcmp.gt.f32.partialorder %v469, 0.0
        %vm478 = vcmp.gt.f32.partialorder %v471, 0.0
        %vm479 = vcmp.gt.f32.partialorder %v473, 0.0
        %vm480 = vcmp.gt.f32.partialorder %v475, 0.0
        %v481 = vmul.f32 %v469, 0.2
        %v482 = vmul.f32 %v471, 0.2
        %v483 = vmul.f32 %v473, 0.2
        %v484 = vmul.f32 %v475, 0.2
        %v485 = vsel %vm477, %v469, %v481
        %v486 = vsel %vm478, %v471, %v482
        %v487 = vsel %vm479, %v473, %v483
        %v488 = vsel %vm480, %v475, %v484
        %v489 = vadd.f32 %v485, %v487
        %v490 = vrot.slane %v489, 4
        %v491 = vadd.f32 %v489, %v490
        %v492 = vrot.slane %v491, 2
        %v493 = vadd.f32 %v491, %v492
        %v494 = vrot.slane %v493, 1
        %v495 = vadd.f32 %v493, %v494
        %v496 = vadd.f32 %v486, %v488
        %v497 = vrot.slane %v496, 4
        %v498 = vadd.f32 %v496, %v497
        %v499 = vrot.slane %v498, 2
        %v500 = vadd.f32 %v498, %v499
        %v501 = vrot.slane %v500, 1
        %v502 = vadd.f32 %v500, %v501
        %v503 = vrcp.pop 16.0
        %v504 = vmul.f32 %v495, %v503
        %v505 = vmul.f32 %v502, %v503
        %v506 = vsub.f32 %v485, %v504
        %v507 = vsub.f32 %v486, %v505
        %v508 = vsub.f32 %v487, %v504
        %v509 = vsub.f32 %v488, %v505
        %v510 = vmul.f32 %v506, %v506
        %v511 = vmul.f32 %v507, %v507
        %v512 = vmul.f32 %v508, %v508
        %v513 = vmul.f32 %v509, %v509
        %v514 = vadd.f32 %v510, %v512
        %v515 = vrot.slane %v514, 4
        %v516 = vadd.f32 %v514, %v515
        %v517 = vrot.slane %v516, 2
        %v518 = vadd.f32 %v516, %v517
        %v519 = vrot.slane %v518, 1
        %v520 = vadd.f32 %v518, %v519
        %v521 = vadd.f32 %v511, %v513
        %v522 = vrot.slane %v521, 4
        %v523 = vadd.f32 %v521, %v522
        %v524 = vrot.slane %v523, 2
        %v525 = vadd.f32 %v523, %v524
        %v526 = vrot.slane %v525, 1
        %v527 = vadd.f32 %v525, %v526
        %v528 = vmul.f32 %v520, %v503
        %v529 = vmul.f32 %v527, %v503
        %v530 = vadd.f32 %v528, 1e-05
        %v531 = vadd.f32 %v529, 1e-05
        %v532 = vrsqrt.pop %v530
        %v533 = vrsqrt.pop %v531
        %v536 = vcombine.low %v532, %v533
        %v538 = vunpack.c.l.s4 1966171168
        %v539 = vunpack.c.0.s8 %v538
        %v540 = vlaneseq
        %v541 = vshrl.u32 %v540, 7
        %v542 = vsub.s32 %v539, %v541
        %v543 = vrot.slane %v536, %v542
        %v545 = vunpack.c.l.s4 1966171168
        %v546 = vunpack.c.0.s8 %v545
        %v547 = vlaneseq
        %v548 = vshrl.u32 %v547, 7
        %v549 = vsub.s32 %v546, %v548
        %v550 = vrot.slane %v543, %v549
        %v552 = vmul.f32 %v334, %v550
        %v554 = vlaneseq
        %v555 = vshrl.u32 %v554, 7
        %v556 = vsub.s32 0, %v555
        %v557 = vrot.slane %v552, %v556
        %v558 = vlaneseq
        %v559 = vshrl.u32 %v558, 7
        %v560 = vsub.s32 1, %v559
        %v561 = vrot.slane %v552, %v560
        %v564 = vmul.f32 %v504, %v557
        %v565 = vmul.f32 %v505, %v561
        %v568 = vcombine.low %v564, %v565
        %v570 = vunpack.c.l.s4 1966171168
        %v571 = vunpack.c.0.s8 %v570
        %v572 = vlaneseq
        %v573 = vshrl.u32 %v572, 7
        %v574 = vsub.s32 %v571, %v573
        %v575 = vrot.slane %v568, %v574
        %v577 = vunpack.c.l.s4 1966171168
        %v578 = vunpack.c.0.s8 %v577
        %v579 = vlaneseq
        %v580 = vshrl.u32 %v579, 7
        %v581 = vsub.s32 %v578, %v580
        %v582 = vrot.slane %v575, %v581
        %v584 = vsub.f32 %v336, %v582
        %v585 = vmul.f32 %v485, %v557
        %v586 = vmul.f32 %v486, %v561
        %v587 = vmul.f32 %v487, %v557
        %v588 = vmul.f32 %v488, %v561
        %v590 = vlaneseq
        %v591 = vshrl.u32 %v590, 7
        %v592 = vsub.s32 0, %v591
        %v593 = vrot.slane %v584, %v592
        %v594 = vlaneseq
        %v595 = vshrl.u32 %v594, 7
        %v596 = vsub.s32 1, %v595
        %v597 = vrot.slane %v584, %v596
        %v600 = vadd.f32 %v585, %v593
        %v601 = vadd.f32 %v586, %v597
        %v602 = vadd.f32 %v587, %v593
        %v603 = vadd.f32 %v588, %v597
        %v604 = vld [vmem:[#allocation5] sm:$0xf]
        %v605 = vld [vmem:[#allocation5 + $0x4] sm:$0xf]
        %v606 = vld [vmem:[#allocation5 + $0x8] sm:$0xf]
        %v607 = vld [vmem:[#allocation5 + $0xc] sm:$0xf]
        %v608 = vld [vmem:[#allocation5 + $0x10] sm:$0xf]
        %v609 = vld [vmem:[#allocation5 + $0x14] sm:$0xf]
        %v610 = vld [vmem:[#allocation5 + $0x18] sm:$0xf]
        %v611 = vld [vmem:[#allocation5 + $0x1c] sm:$0xf]
        %v612 = vld [vmem:[#allocation5 + $0x20] sm:$0xf]
        %v613 = vld [vmem:[#allocation5 + $0x24] sm:$0xf]
        %v614 = vld [vmem:[#allocation5 + $0x28] sm:$0xf]
        %v615 = vld [vmem:[#allocation5 + $0x2c] sm:$0xf]
        %v616 = vld [vmem:[#allocation5 + $0x30] sm:$0xf]
        %v617 = vld [vmem:[#allocation5 + $0x34] sm:$0xf]
        %v618 = vld [vmem:[#allocation5 + $0x38] sm:$0xf]
        %v619 = vld [vmem:[#allocation5 + $0x3c] sm:$0xf]
        %v620 = vld [vmem:[#allocation5 + $0x40] sm:$0xf]
        %v621 = vld [vmem:[#allocation5 + $0x44] sm:$0xf]
        %v622 = vld [vmem:[#allocation5 + $0x48] sm:$0xf]
        %v623 = vld [vmem:[#allocation5 + $0x4c] sm:$0xf]
        %v624 = vld [vmem:[#allocation5 + $0x50] sm:$0xf]
        %v625 = vld [vmem:[#allocation5 + $0x54] sm:$0xf]
        %v626 = vld [vmem:[#allocation5 + $0x58] sm:$0xf]
        %v627 = vld [vmem:[#allocation5 + $0x5c] sm:$0xf]
        %v628 = vld [vmem:[#allocation5 + $0x60] sm:$0xf]
        %v629 = vld [vmem:[#allocation5 + $0x64] sm:$0xf]
        %v630 = vld [vmem:[#allocation5 + $0x68] sm:$0xf]
        %v631 = vld [vmem:[#allocation5 + $0x6c] sm:$0xf]
        %v632 = vld [vmem:[#allocation5 + $0x70] sm:$0xf]
        %v633 = vld [vmem:[#allocation5 + $0x74] sm:$0xf]
        %v634 = vld [vmem:[#allocation5 + $0x78] sm:$0xf]
        %v635 = vld [vmem:[#allocation5 + $0x7c] sm:$0xf]
        %v636 = vld [vmem:[%s4 + $0x3] ss:$0 sm:$0xff]
        %v637 = vld [vmem:[%s4 + $0x4] ss:$0 sm:$0xff]
        %v638 = vld [vmem:[%s4 + $0x5] ss:$0 sm:$0xff]
        %v639 = vpack.c.bf16 %v602, %v600
        %v640 = vpack.c.bf16 %v603, %v601
        %v673 = vunpack.c.l.b16 %v604
        %v674 = vunpack.c.l.b16 %v605
        %v675 = vunpack.c.l.b16 %v606
        %v676 = vunpack.c.l.b16 %v607
        %v677 = vunpack.c.l.b16 %v608
        %v678 = vunpack.c.l.b16 %v609
        %v679 = vunpack.c.l.b16 %v610
        %v680 = vunpack.c.l.b16 %v611
        %v681 = vunpack.c.l.b16 %v612
        %v682 = vunpack.c.l.b16 %v613
        %v683 = vunpack.c.l.b16 %v614
        %v684 = vunpack.c.l.b16 %v615
        %v685 = vunpack.c.l.b16 %v616
        %v686 = vunpack.c.l.b16 %v617
        %v687 = vunpack.c.l.b16 %v618
        %v688 = vunpack.c.l.b16 %v619
        %v689 = vunpack.c.l.b16 %v620
        %v690 = vunpack.c.l.b16 %v621
        %v691 = vunpack.c.l.b16 %v622
        %v692 = vunpack.c.l.b16 %v623
        %v693 = vunpack.c.l.b16 %v624
        %v694 = vunpack.c.l.b16 %v625
        %v695 = vunpack.c.l.b16 %v626
        %v696 = vunpack.c.l.b16 %v627
        %v697 = vunpack.c.l.b16 %v628
        %v698 = vunpack.c.l.b16 %v629
        %v699 = vunpack.c.l.b16 %v630
        %v700 = vunpack.c.l.b16 %v631
        %v701 = vunpack.c.l.b16 %v632
        %v702 = vunpack.c.l.b16 %v633
        %v703 = vunpack.c.l.b16 %v634
        %v704 = vunpack.c.l.b16 %v635
        %v705 = vpack.c.b16 %v674, %v673
        %v706 = vpack.c.b16 %v676, %v675
        %v707 = vpack.c.b16 %v678, %v677
        %v708 = vpack.c.b16 %v680, %v679
        %v709 = vpack.c.b16 %v682, %v681
        %v710 = vpack.c.b16 %v684, %v683
        %v711 = vpack.c.b16 %v686, %v685
        %v712 = vpack.c.b16 %v688, %v687
        %v713 = vpack.c.b16 %v690, %v689
        %v714 = vpack.c.b16 %v692, %v691
        %v715 = vpack.c.b16 %v694, %v693
        %v716 = vpack.c.b16 %v696, %v695
        %v717 = vpack.c.b16 %v698, %v697
        %v718 = vpack.c.b16 %v700, %v699
        %v719 = vpack.c.b16 %v702, %v701
        %v720 = vpack.c.b16 %v704, %v703
        %737 = vmatprep.subr.bf16.mxu0 0
        %738 = vmatpush1.bf16.msra.mxu0 %v712
        %739 = vmatprep.subr.bf16.mxu0 0
        %740 = vmatpush1.bf16.msra.mxu0 %v711
        %741 = vmatprep.subr.bf16.mxu0 0
        %742 = vmatpush1.bf16.msra.mxu0 %v710
        %743 = vmatprep.subr.bf16.mxu0 0
        %744 = vmatpush1.bf16.msra.mxu0 %v709
        %745 = vmatprep.subr.bf16.mxu0 0
        %746 = vmatpush1.bf16.msra.mxu0 %v708
        %747 = vmatprep.subr.bf16.mxu0 0
        %748 = vmatpush1.bf16.msra.mxu0 %v707
        %749 = vmatprep.subr.bf16.mxu0 0
        %750 = vmatpush1.bf16.msra.mxu0 %v706
        %751 = vmatprep.subr.bf16.mxu0 0
        %752 = vmatpush1.bf16.msra.mxu0 %v705
        %753 = vmatprep.subr.bf16.mxu0 0
        %754 = vmatpush2.bf16.msra.mxu0 %v720
        %755 = vmatprep.subr.bf16.mxu0 0
        %756 = vmatpush2.bf16.msra.mxu0 %v719
        %757 = vmatprep.subr.bf16.mxu0 0
        %758 = vmatpush2.bf16.msra.mxu0 %v718
        %759 = vmatprep.subr.bf16.mxu0 0
        %760 = vmatpush2.bf16.msra.mxu0 %v717
        %761 = vmatprep.subr.bf16.mxu0 0
        %762 = vmatpush2.bf16.msra.mxu0 %v716
        %763 = vmatprep.subr.bf16.mxu0 0
        %764 = vmatpush2.bf16.msra.mxu0 %v715
        %765 = vmatprep.subr.bf16.mxu0 0
        %766 = vmatpush2.bf16.msra.mxu0 %v714
        %767 = vmatprep.subr.bf16.mxu0 0
        %768 = vmatpush2.bf16.msra.mxu0 %v713
        %769 = vmatprep.mubr.bf16.mxu0 %v640
        %770 = vmatmul.mubr.bf16.gmra.mxu0 %v639
        %v771 = vpop.f32.mrf.mxu0
        %v772 = vadd.f32 %v636, %v771
        %v773 = vpop.f32.mrf.mxu0
        %v774 = vpop.f32.mrf.mxu0
        %v775 = vadd.f32 %v636, %v774
        %v776 = vpop.f32.mrf.mxu0
        %777 = vdwg.mxu0
        %vm778 = vcmp.gt.f32.partialorder %v772, 0.0
        %vm779 = vcmp.gt.f32.partialorder %v775, 0.0
        %v780 = vmul.f32 %v772, 0.2
        %v781 = vmul.f32 %v775, 0.2
        %v782 = vsel %vm778, %v772, %v780
        %v783 = vsel %vm779, %v775, %v781
        %v784 = vadd.f32 %v782, %v783
        %v785 = vrot.slane %v784, 4
        %v786 = vadd.f32 %v784, %v785
        %v787 = vrot.slane %v786, 2
        %v788 = vadd.f32 %v786, %v787
        %v789 = vrot.slane %v788, 1
        %v790 = vadd.f32 %v788, %v789
        %v791 = vmul.f32 %v790, %v503
        %v792 = vsub.f32 %v782, %v791
        %v793 = vsub.f32 %v783, %v791
        %v794 = vmul.f32 %v792, %v792
        %v795 = vmul.f32 %v793, %v793
        %v796 = vadd.f32 %v794, %v795
        %v797 = vrot.slane %v796, 4
        %v798 = vadd.f32 %v796, %v797
        %v799 = vrot.slane %v798, 2
        %v800 = vadd.f32 %v798, %v799
        %v801 = vrot.slane %v800, 1
        %v802 = vadd.f32 %v800, %v801
        %v803 = vmul.f32 %v802, %v503
        %v804 = vadd.f32 %v803, 1e-05
        %v805 = vrsqrt.pop %v804
        %v806 = vmul.f32 %v637, %v805
        %v807 = vmul.f32 %v791, %v806
        %v808 = vsub.f32 %v638, %v807
        %v809 = vmul.f32 %v782, %v806
        %v810 = vmul.f32 %v783, %v806
        %v811 = vadd.f32 %v809, %v808
        %v812 = vadd.f32 %v810, %v808
        %v813 = vld [vmem:[#allocation5 + $0x80] sm:$0xf]
        %v814 = vld [vmem:[#allocation5 + $0x84] sm:$0xf]
        %v815 = vld [vmem:[#allocation5 + $0x88] sm:$0xf]
        %v816 = vld [vmem:[#allocation5 + $0x8c] sm:$0xf]
        %v817 = vld [vmem:[#allocation5 + $0x90] sm:$0xf]
        %v818 = vld [vmem:[#allocation5 + $0x94] sm:$0xf]
        %v819 = vld [vmem:[#allocation5 + $0x98] sm:$0xf]
        %v820 = vld [vmem:[#allocation5 + $0x9c] sm:$0xf]
        %v821 = vld [vmem:[#allocation5 + $0xa0] sm:$0xf]
        %v822 = vld [vmem:[#allocation5 + $0xa4] sm:$0xf]
        %v823 = vld [vmem:[#allocation5 + $0xa8] sm:$0xf]
        %v824 = vld [vmem:[#allocation5 + $0xac] sm:$0xf]
        %v825 = vld [vmem:[#allocation5 + $0xb0] sm:$0xf]
        %v826 = vld [vmem:[#allocation5 + $0xb4] sm:$0xf]
        %v827 = vld [vmem:[#allocation5 + $0xb8] sm:$0xf]
        %v828 = vld [vmem:[#allocation5 + $0xbc] sm:$0xf]
        %v829 = vld [vmem:[%s4 + $0x6] ss:$0 sm:$0xff]
        %v830 = vpack.c.bf16 %v812, %v811
        %v847 = vunpack.c.l.b16 %v813
        %v848 = vunpack.c.l.b16 %v814
        %v849 = vunpack.c.l.b16 %v815
        %v850 = vunpack.c.l.b16 %v816
        %v851 = vunpack.c.l.b16 %v817
        %v852 = vunpack.c.l.b16 %v818
        %v853 = vunpack.c.l.b16 %v819
        %v854 = vunpack.c.l.b16 %v820
        %v855 = vunpack.c.l.b16 %v821
        %v856 = vunpack.c.l.b16 %v822
        %v857 = vunpack.c.l.b16 %v823
        %v858 = vunpack.c.l.b16 %v824
        %v859 = vunpack.c.l.b16 %v825
        %v860 = vunpack.c.l.b16 %v826
        %v861 = vunpack.c.l.b16 %v827
        %v862 = vunpack.c.l.b16 %v828
        %v863 = vpack.c.b16 %v848, %v847
        %v864 = vpack.c.b16 %v850, %v849
        %v865 = vpack.c.b16 %v852, %v851
        %v866 = vpack.c.b16 %v854, %v853
        %v867 = vpack.c.b16 %v856, %v855
        %v868 = vpack.c.b16 %v858, %v857
        %v869 = vpack.c.b16 %v860, %v859
        %v870 = vpack.c.b16 %v862, %v861
        %879 = vmatprep.subr.bf16.mxu0 0
        %880 = vmatpush1.bf16.msra.mxu0 %v870
        %881 = vmatprep.subr.bf16.mxu0 0
        %882 = vmatpush1.bf16.msra.mxu0 %v869
        %883 = vmatprep.subr.bf16.mxu0 0
        %884 = vmatpush1.bf16.msra.mxu0 %v868
        %885 = vmatprep.subr.bf16.mxu0 0
        %886 = vmatpush1.bf16.msra.mxu0 %v867
        %887 = vmatprep.subr.bf16.mxu0 0
        %888 = vmatpush1.bf16.msra.mxu0 %v866
        %889 = vmatprep.subr.bf16.mxu0 0
        %890 = vmatpush1.bf16.msra.mxu0 %v865
        %891 = vmatprep.subr.bf16.mxu0 0
        %892 = vmatpush1.bf16.msra.mxu0 %v864
        %893 = vmatprep.subr.bf16.mxu0 0
        %894 = vmatpush1.bf16.msra.mxu0 %v863
        %895 = vmatprep.subr.bf16.mxu0 0
        %896 = vmatpush2.bf16.msra.mxu0 0
        %897 = vmatprep.subr.bf16.mxu0 0
        %898 = vmatpush2.bf16.msra.mxu0 0
        %899 = vmatprep.subr.bf16.mxu0 0
        %900 = vmatpush2.bf16.msra.mxu0 0
        %901 = vmatprep.subr.bf16.mxu0 0
        %902 = vmatpush2.bf16.msra.mxu0 0
        %903 = vmatprep.subr.bf16.mxu0 0
        %904 = vmatpush2.bf16.msra.mxu0 0
        %905 = vmatprep.subr.bf16.mxu0 0
        %906 = vmatpush2.bf16.msra.mxu0 0
        %907 = vmatprep.subr.bf16.mxu0 0
        %908 = vmatpush2.bf16.msra.mxu0 0
        %909 = vmatprep.subr.bf16.mxu0 0
        %910 = vmatpush2.bf16.msra.mxu0 0
        %911 = vmatprep.mubr.bf16.mxu0 0
        %912 = vmatmul.mubr.bf16.gmra.mxu0 %v830
        %v913 = vpop.f32.mrf.mxu0
        %v914 = vadd.f32 %v829, %v913
        %v915 = vpop.f32.mrf.mxu0
        %v916 = vpop.f32.mrf.mxu0
        %v917 = vadd.f32 %v829, %v916
        %v918 = vpop.f32.mrf.mxu0
        %919 = vdwg.mxu0
        %v920 = vmul.f32 %v914, 0.5
        %v921 = vmul.f32 %v917, 0.5
        %v922 = vmul.f32 %v920, 1.442695
        %v923 = vpow.pop %v922
        %v924 = vmul.f32 %v921, 1.442695
        %v925 = vpow.pop %v924
        %v926 = vld [vmem:[%s307] sm:$0xff]
        %v927 = vld [vmem:[%s307 + $0x8] sm:$0xff]
        %930 = vrot.lane.b32.xlu0 %v923, 64
        %v931 = vpop.permute.xlu0 %930
        %932 = vrot.lane.b32.xlu0 %v925, 64
        %v933 = vpop.permute.xlu0 %932
        %v936 = vmul.f32 %v926, %v931
        %v937 = vmul.f32 %v927, %v933
        %v938 = vadd.f32 %v914, %v936
        %v939 = vadd.f32 %v917, %v937
        %v940 = vld [vmem:[#allocation5 + $0xc0] sm:$0xf]
        %v941 = vld [vmem:[#allocation5 + $0xc4] sm:$0xf]
        %v942 = vld [vmem:[#allocation5 + $0xc8] sm:$0xf]
        %v943 = vld [vmem:[#allocation5 + $0xcc] sm:$0xf]
        %v944 = vld [vmem:[#allocation5 + $0xd0] sm:$0xf]
        %v945 = vld [vmem:[#allocation5 + $0xd4] sm:$0xf]
        %v946 = vld [vmem:[#allocation5 + $0xd8] sm:$0xf]
        %v947 = vld [vmem:[#allocation5 + $0xdc] sm:$0xf]
        %v948 = vld [vmem:[%s4 + $0x7] ss:$0 sm:$0xff]
        %v949 = vld [vmem:[%s4 + $0x10] ss:$0 sm:$0xff]
        %v950 = vld [vmem:[%s4 + $0x11] ss:$0 sm:$0xff]
        %v951 = vpack.c.bf16 %v939, %v938
        %v960 = vunpack.c.l.b16 %v940
        %v961 = vunpack.c.l.b16 %v941
        %v962 = vunpack.c.l.b16 %v942
        %v963 = vunpack.c.l.b16 %v943
        %v964 = vunpack.c.l.b16 %v944
        %v965 = vunpack.c.l.b16 %v945
        %v966 = vunpack.c.l.b16 %v946
        %v967 = vunpack.c.l.b16 %v947
        %v968 = vpack.c.b16 %v961, %v960
        %v969 = vpack.c.b16 %v963, %v962
        %v970 = vpack.c.b16 %v965, %v964
        %v971 = vpack.c.b16 %v967, %v966
        %vm976 = vcmask 523264
        %v978 = vsel %vm976, %v951, 0
        %980 = vmatprep.subr.bf16.mxu0 0
        %981 = vmatpush1.bf16.msra.mxu0 0
        %982 = vmatprep.subr.bf16.mxu0 0
        %983 = vmatpush1.bf16.msra.mxu0 0
        %984 = vmatprep.subr.bf16.mxu0 0
        %985 = vmatpush1.bf16.msra.mxu0 0
        %986 = vmatprep.subr.bf16.mxu0 0
        %987 = vmatpush1.bf16.msra.mxu0 0
        %988 = vmatprep.subr.bf16.mxu0 0
        %989 = vmatpush1.bf16.msra.mxu0 %v971
        %990 = vmatprep.subr.bf16.mxu0 0
        %991 = vmatpush1.bf16.msra.mxu0 %v970
        %992 = vmatprep.subr.bf16.mxu0 0
        %993 = vmatpush1.bf16.msra.mxu0 %v969
        %994 = vmatprep.subr.bf16.mxu0 0
        %995 = vmatpush1.bf16.msra.mxu0 %v968
        %996 = vmatprep.subr.bf16.mxu0 0
        %997 = vmatpush2.bf16.msra.mxu0 0
        %998 = vmatprep.subr.bf16.mxu0 0
        %999 = vmatpush2.bf16.msra.mxu0 0
        %1000 = vmatprep.subr.bf16.mxu0 0
        %1001 = vmatpush2.bf16.msra.mxu0 0
        %1002 = vmatprep.subr.bf16.mxu0 0
        %1003 = vmatpush2.bf16.msra.mxu0 0
        %1004 = vmatprep.subr.bf16.mxu0 0
        %1005 = vmatpush2.bf16.msra.mxu0 0
        %1006 = vmatprep.subr.bf16.mxu0 0
        %1007 = vmatpush2.bf16.msra.mxu0 0
        %1008 = vmatprep.subr.bf16.mxu0 0
        %1009 = vmatpush2.bf16.msra.mxu0 0
        %1010 = vmatprep.subr.bf16.mxu0 0
        %1011 = vmatpush2.bf16.msra.mxu0 0
        %1012 = vmatprep.mubr.bf16.mxu0 0
        %1013 = vmatmul.mubr.bf16.gmra.mxu0 %v978
        %v1014 = vpop.f32.mrf.mxu0
        %v1015 = vadd.f32 %v948, %v1014
        %v1016 = vpop.f32.mrf.mxu0
        %v1017 = vpop.f32.mrf.mxu0
        %v1018 = vadd.f32 %v948, %v1017
        %v1019 = vpop.f32.mrf.mxu0
        %1020 = vdwg.mxu0
        %vm1021 = vcmp.gt.f32.partialorder %v1015, 0.0
        %vm1022 = vcmp.gt.f32.partialorder %v1018, 0.0
        %v1023 = vmul.f32 %v1015, 0.2
        %v1024 = vmul.f32 %v1018, 0.2
        %v1025 = vsel %vm1021, %v1015, %v1023
        %v1026 = vsel %vm1022, %v1018, %v1024
        %v1027 = vadd.f32 %v1025, %v1026
        %v1028 = vrot.slane %v1027, 4
        %v1029 = vadd.f32 %v1027, %v1028
        %v1030 = vrot.slane %v1029, 2
        %v1031 = vadd.f32 %v1029, %v1030
        %v1032 = vrot.slane %v1031, 1
        %v1033 = vadd.f32 %v1031, %v1032
        %v1034 = vmul.f32 %v1033, %v503
        %v1035 = vsub.f32 %v1025, %v1034
        %v1036 = vsub.f32 %v1026, %v1034
        %v1037 = vmul.f32 %v1035, %v1035
        %v1038 = vmul.f32 %v1036, %v1036
        %v1039 = vadd.f32 %v1037, %v1038
        %v1040 = vrot.slane %v1039, 4
        %v1041 = vadd.f32 %v1039, %v1040
        %v1042 = vrot.slane %v1041, 2
        %v1043 = vadd.f32 %v1041, %v1042
        %v1044 = vrot.slane %v1043, 1
        %v1045 = vadd.f32 %v1043, %v1044
        %v1046 = vmul.f32 %v1045, %v503
        %v1047 = vadd.f32 %v1046, 1e-05
        %v1048 = vrsqrt.pop %v1047
        %v1049 = vmul.f32 %v949, %v1048
        %v1050 = vmul.f32 %v1034, %v1049
        %v1051 = vsub.f32 %v950, %v1050
        %v1052 = vmul.f32 %v1025, %v1049
        %v1053 = vmul.f32 %v1026, %v1049
        %v1054 = vadd.f32 %v1052, %v1051
        %v1055 = vadd.f32 %v1053, %v1051
        %v1056 = vld [vmem:[#allocation2 + $0x80] sm:$0xff]
        %v1057 = vld [vmem:[#allocation2 + $0x88] sm:$0xff]
        %v1058 = vld [vmem:[#allocation2 + $0x90] sm:$0xff]
        %v1059 = vld [vmem:[#allocation2 + $0x98] sm:$0xff]
        %v1060 = vld [vmem:[#allocation2 + $0xa0] sm:$0xff]
        %v1061 = vld [vmem:[#allocation2 + $0xa8] sm:$0xff]
        %v1062 = vld [vmem:[#allocation2 + $0xb0] sm:$0xff]
        %v1063 = vld [vmem:[#allocation2 + $0xb8] sm:$0xff]
        %v1064 = vld [vmem:[#allocation2 + $0xc0] sm:$0xff]
        %v1065 = vld [vmem:[#allocation2 + $0xc8] sm:$0xff]
        %v1066 = vld [vmem:[#allocation2 + $0xd0] sm:$0xff]
        %v1067 = vld [vmem:[#allocation2 + $0xd8] sm:$0xff]
        %v1068 = vld [vmem:[#allocation2 + $0xe0] sm:$0xff]
        %v1069 = vld [vmem:[#allocation2 + $0xe8] sm:$0xff]
        %v1070 = vld [vmem:[#allocation2 + $0xf0] sm:$0xff]
        %v1071 = vld [vmem:[#allocation2 + $0xf8] sm:$0xff]
        %s1072 = scalar_lea.vmem %s4, 18
        %v1073 = vld [vmem:[%s1072] ss:$8 sm:$0x3]
        %s1074 = scalar_lea.vmem %s4, 19
        %v1075 = vld [vmem:[%s1074] ss:$8 sm:$0x3]
        %s1076 = scalar_lea.vmem %s4, 20
        %v1077 = vld [vmem:[%s1076] ss:$8 sm:$0x3]
        %v1078 = vpack.c.bf16 %v1055, %v1054
        %v1080 = vlaneseq
        %v1081 = vshrl.u32 %v1080, 7
        %v1082 = vsub.s32 0, %v1081
        %v1083 = vrot.slane %v1073, %v1082
        %v1084 = vlaneseq
        %v1085 = vshrl.u32 %v1084, 7
        %v1086 = vsub.s32 1, %v1085
        %v1087 = vrot.slane %v1073, %v1086
        %v1106 = vunpack.c.l.b16 %v1056
        %v1107 = vunpack.c.h.b16 %v1056
        %v1108 = vunpack.c.l.b16 %v1057
        %v1109 = vunpack.c.h.b16 %v1057
        %v1110 = vunpack.c.l.b16 %v1058
        %v1111 = vunpack.c.h.b16 %v1058
        %v1112 = vunpack.c.l.b16 %v1059
        %v1113 = vunpack.c.h.b16 %v1059
        %v1114 = vunpack.c.l.b16 %v1060
        %v1115 = vunpack.c.h.b16 %v1060
        %v1116 = vunpack.c.l.b16 %v1061
        %v1117 = vunpack.c.h.b16 %v1061
        %v1118 = vunpack.c.l.b16 %v1062
        %v1119 = vunpack.c.h.b16 %v1062
        %v1120 = vunpack.c.l.b16 %v1063
        %v1121 = vunpack.c.h.b16 %v1063
        %v1122 = vunpack.c.l.b16 %v1064
        %v1123 = vunpack.c.h.b16 %v1064
        %v1124 = vunpack.c.l.b16 %v1065
        %v1125 = vunpack.c.h.b16 %v1065
        %v1126 = vunpack.c.l.b16 %v1066
        %v1127 = vunpack.c.h.b16 %v1066
        %v1128 = vunpack.c.l.b16 %v1067
        %v1129 = vunpack.c.h.b16 %v1067
        %v1130 = vunpack.c.l.b16 %v1068
        %v1131 = vunpack.c.h.b16 %v1068
        %v1132 = vunpack.c.l.b16 %v1069
        %v1133 = vunpack.c.h.b16 %v1069
        %v1134 = vunpack.c.l.b16 %v1070
        %v1135 = vunpack.c.h.b16 %v1070
        %v1136 = vunpack.c.l.b16 %v1071
        %v1137 = vunpack.c.h.b16 %v1071
        %v1138 = vpack.c.b16 %v1108, %v1106
        %v1139 = vpack.c.b16 %v1109, %v1107
        %v1140 = vpack.c.b16 %v1112, %v1110
        %v1141 = vpack.c.b16 %v1113, %v1111
        %v1142 = vpack.c.b16 %v1116, %v1114
        %v1143 = vpack.c.b16 %v1117, %v1115
        %v1144 = vpack.c.b16 %v1120, %v1118
        %v1145 = vpack.c.b16 %v1121, %v1119
        %v1146 = vpack.c.b16 %v1124, %v1122
        %v1147 = vpack.c.b16 %v1125, %v1123
        %v1148 = vpack.c.b16 %v1128, %v1126
        %v1149 = vpack.c.b16 %v1129, %v1127
        %v1150 = vpack.c.b16 %v1132, %v1130
        %v1151 = vpack.c.b16 %v1133, %v1131
        %v1152 = vpack.c.b16 %v1136, %v1134
        %v1153 = vpack.c.b16 %v1137, %v1135
        %1170 = vmatprep.subr.bf16.mxu0 %v1153
        %1171 = vmatpush1.bf16.msra.mxu0 %v1152
        %1172 = vmatprep.subr.bf16.mxu0 %v1151
        %1173 = vmatpush1.bf16.msra.mxu0 %v1150
        %1174 = vmatprep.subr.bf16.mxu0 %v1149
        %1175 = vmatpush1.bf16.msra.mxu0 %v1148
        %1176 = vmatprep.subr.bf16.mxu0 %v1147
        %1177 = vmatpush1.bf16.msra.mxu0 %v1146
        %1178 = vmatprep.subr.bf16.mxu0 %v1145
        %1179 = vmatpush1.bf16.msra.mxu0 %v1144
        %1180 = vmatprep.subr.bf16.mxu0 %v1143
        %1181 = vmatpush1.bf16.msra.mxu0 %v1142
        %1182 = vmatprep.subr.bf16.mxu0 %v1141
        %1183 = vmatpush1.bf16.msra.mxu0 %v1140
        %1184 = vmatprep.subr.bf16.mxu0 %v1139
        %1185 = vmatpush1.bf16.msra.mxu0 %v1138
        %1186 = vmatprep.subr.bf16.mxu0 0
        %1187 = vmatpush2.bf16.msra.mxu0 0
        %1188 = vmatprep.subr.bf16.mxu0 0
        %1189 = vmatpush2.bf16.msra.mxu0 0
        %1190 = vmatprep.subr.bf16.mxu0 0
        %1191 = vmatpush2.bf16.msra.mxu0 0
        %1192 = vmatprep.subr.bf16.mxu0 0
        %1193 = vmatpush2.bf16.msra.mxu0 0
        %1194 = vmatprep.subr.bf16.mxu0 0
        %1195 = vmatpush2.bf16.msra.mxu0 0
        %1196 = vmatprep.subr.bf16.mxu0 0
        %1197 = vmatpush2.bf16.msra.mxu0 0
        %1198 = vmatprep.subr.bf16.mxu0 0
        %1199 = vmatpush2.bf16.msra.mxu0 0
        %1200 = vmatprep.subr.bf16.mxu0 0
        %1201 = vmatpush2.bf16.msra.mxu0 0
        %1202 = vmatprep.mubr.bf16.mxu0 0
        %1203 = vmatmul.mubr.bf16.gmra.mxu0 %v1078
        %v1204 = vpop.f32.mrf.mxu0
        %v1205 = vadd.f32 %v1083, %v1204
        %v1206 = vpop.f32.mrf.mxu0
        %v1207 = vadd.f32 %v1087, %v1206
        %v1208 = vpop.f32.mrf.mxu0
        %v1209 = vadd.f32 %v1083, %v1208
        %v1210 = vpop.f32.mrf.mxu0
        %v1211 = vadd.f32 %v1087, %v1210
        %1212 = vdwg.mxu0
        %vm1213 = vcmp.gt.f32.partialorder %v1205, 0.0
        %vm1214 = vcmp.gt.f32.partialorder %v1207, 0.0
        %vm1215 = vcmp.gt.f32.partialorder %v1209, 0.0
        %vm1216 = vcmp.gt.f32.partialorder %v1211, 0.0
        %v1217 = vmul.f32 %v1205, 0.2
        %v1218 = vmul.f32 %v1207, 0.2
        %v1219 = vmul.f32 %v1209, 0.2
        %v1220 = vmul.f32 %v1211, 0.2
        %v1221 = vsel %vm1213, %v1205, %v1217
        %v1222 = vsel %vm1214, %v1207, %v1218
        %v1223 = vsel %vm1215, %v1209, %v1219
        %v1224 = vsel %vm1216, %v1211, %v1220
        %v1225 = vadd.f32 %v1221, %v1223
        %v1226 = vrot.slane %v1225, 4
        %v1227 = vadd.f32 %v1225, %v1226
        %v1228 = vrot.slane %v1227, 2
        %v1229 = vadd.f32 %v1227, %v1228
        %v1230 = vrot.slane %v1229, 1
        %v1231 = vadd.f32 %v1229, %v1230
        %v1232 = vadd.f32 %v1222, %v1224
        %v1233 = vrot.slane %v1232, 4
        %v1234 = vadd.f32 %v1232, %v1233
        %v1235 = vrot.slane %v1234, 2
        %v1236 = vadd.f32 %v1234, %v1235
        %v1237 = vrot.slane %v1236, 1
        %v1238 = vadd.f32 %v1236, %v1237
        %v1239 = vmul.f32 %v1231, %v503
        %v1240 = vmul.f32 %v1238, %v503
        %v1241 = vsub.f32 %v1221, %v1239
        %v1242 = vsub.f32 %v1222, %v1240
        %v1243 = vsub.f32 %v1223, %v1239
        %v1244 = vsub.f32 %v1224, %v1240
        %v1245 = vmul.f32 %v1241, %v1241
        %v1246 = vmul.f32 %v1242, %v1242
        %v1247 = vmul.f32 %v1243, %v1243
        %v1248 = vmul.f32 %v1244, %v1244
        %v1249 = vadd.f32 %v1245, %v1247
        %v1250 = vrot.slane %v1249, 4
        %v1251 = vadd.f32 %v1249, %v1250
        %v1252 = vrot.slane %v1251, 2
        %v1253 = vadd.f32 %v1251, %v1252
        %v1254 = vrot.slane %v1253, 1
        %v1255 = vadd.f32 %v1253, %v1254
        %v1256 = vadd.f32 %v1246, %v1248
        %v1257 = vrot.slane %v1256, 4
        %v1258 = vadd.f32 %v1256, %v1257
        %v1259 = vrot.slane %v1258, 2
        %v1260 = vadd.f32 %v1258, %v1259
        %v1261 = vrot.slane %v1260, 1
        %v1262 = vadd.f32 %v1260, %v1261
        %v1263 = vmul.f32 %v1255, %v503
        %v1264 = vmul.f32 %v1262, %v503
        %v1265 = vadd.f32 %v1263, 1e-05
        %v1266 = vadd.f32 %v1264, 1e-05
        %v1267 = vrsqrt.pop %v1265
        %v1268 = vrsqrt.pop %v1266
        %v1271 = vcombine.low %v1267, %v1268
        %v1273 = vunpack.c.l.s4 1966171168
        %v1274 = vunpack.c.0.s8 %v1273
        %v1275 = vlaneseq
        %v1276 = vshrl.u32 %v1275, 7
        %v1277 = vsub.s32 %v1274, %v1276
        %v1278 = vrot.slane %v1271, %v1277
        %v1280 = vunpack.c.l.s4 1966171168
        %v1281 = vunpack.c.0.s8 %v1280
        %v1282 = vlaneseq
        %v1283 = vshrl.u32 %v1282, 7
        %v1284 = vsub.s32 %v1281, %v1283
        %v1285 = vrot.slane %v1278, %v1284
        %v1287 = vmul.f32 %v1075, %v1285
        %v1289 = vlaneseq
        %v1290 = vshrl.u32 %v1289, 7
        %v1291 = vsub.s32 0, %v1290
        %v1292 = vrot.slane %v1287, %v1291
        %v1293 = vlaneseq
        %v1294 = vshrl.u32 %v1293, 7
        %v1295 = vsub.s32 1, %v1294
        %v1296 = vrot.slane %v1287, %v1295
        %v1299 = vmul.f32 %v1239, %v1292
        %v1300 = vmul.f32 %v1240, %v1296
        %v1303 = vcombine.low %v1299, %v1300
        %v1305 = vunpack.c.l.s4 1966171168
        %v1306 = vunpack.c.0.s8 %v1305
        %v1307 = vlaneseq
        %v1308 = vshrl.u32 %v1307, 7
        %v1309 = vsub.s32 %v1306, %v1308
        %v1310 = vrot.slane %v1303, %v1309
        %v1312 = vunpack.c.l.s4 1966171168
        %v1313 = vunpack.c.0.s8 %v1312
        %v1314 = vlaneseq
        %v1315 = vshrl.u32 %v1314, 7
        %v1316 = vsub.s32 %v1313, %v1315
        %v1317 = vrot.slane %v1310, %v1316
        %v1319 = vsub.f32 %v1077, %v1317
        %v1320 = vmul.f32 %v1221, %v1292
        %v1321 = vmul.f32 %v1222, %v1296
        %v1322 = vmul.f32 %v1223, %v1292
        %v1323 = vmul.f32 %v1224, %v1296
        %v1325 = vlaneseq
        %v1326 = vshrl.u32 %v1325, 7
        %v1327 = vsub.s32 0, %v1326
        %v1328 = vrot.slane %v1319, %v1327
        %v1329 = vlaneseq
        %v1330 = vshrl.u32 %v1329, 7
        %v1331 = vsub.s32 1, %v1330
        %v1332 = vrot.slane %v1319, %v1331
        %v1335 = vadd.f32 %v1320, %v1328
        %v1336 = vadd.f32 %v1321, %v1332
        %v1337 = vadd.f32 %v1322, %v1328
        %v1338 = vadd.f32 %v1323, %v1332
        %v1339 = vld [vmem:[#allocation5 + $0xe0] sm:$0xf]
        %v1340 = vld [vmem:[#allocation5 + $0xe4] sm:$0xf]
        %v1341 = vld [vmem:[#allocation5 + $0xe8] sm:$0xf]
        %v1342 = vld [vmem:[#allocation5 + $0xec] sm:$0xf]
        %v1343 = vld [vmem:[#allocation5 + $0xf0] sm:$0xf]
        %v1344 = vld [vmem:[#allocation5 + $0xf4] sm:$0xf]
        %v1345 = vld [vmem:[#allocation5 + $0xf8] sm:$0xf]
        %v1346 = vld [vmem:[#allocation5 + $0xfc] sm:$0xf]
        %v1347 = vld [vmem:[#allocation5 + $0x100] sm:$0xf]
        %v1348 = vld [vmem:[#allocation5 + $0x104] sm:$0xf]
        %v1349 = vld [vmem:[#allocation5 + $0x108] sm:$0xf]
        %v1350 = vld [vmem:[#allocation5 + $0x10c] sm:$0xf]
        %v1351 = vld [vmem:[#allocation5 + $0x110] sm:$0xf]
        %v1352 = vld [vmem:[#allocation5 + $0x114] sm:$0xf]
        %v1353 = vld [vmem:[#allocation5 + $0x118] sm:$0xf]
        %v1354 = vld [vmem:[#allocation5 + $0x11c] sm:$0xf]
        %v1355 = vld [vmem:[#allocation5 + $0x120] sm:$0xf]
        %v1356 = vld [vmem:[#allocation5 + $0x124] sm:$0xf]
        %v1357 = vld [vmem:[#allocation5 + $0x128] sm:$0xf]
        %v1358 = vld [vmem:[#allocation5 + $0x12c] sm:$0xf]
        %v1359 = vld [vmem:[#allocation5 + $0x130] sm:$0xf]
        %v1360 = vld [vmem:[#allocation5 + $0x134] sm:$0xf]
        %v1361 = vld [vmem:[#allocation5 + $0x138] sm:$0xf]
        %v1362 = vld [vmem:[#allocation5 + $0x13c] sm:$0xf]
        %v1363 = vld [vmem:[#allocation5 + $0x140] sm:$0xf]
        %v1364 = vld [vmem:[#allocation5 + $0x144] sm:$0xf]
        %v1365 = vld [vmem:[#allocation5 + $0x148] sm:$0xf]
        %v1366 = vld [vmem:[#allocation5 + $0x14c] sm:$0xf]
        %v1367 = vld [vmem:[#allocation5 + $0x150] sm:$0xf]
        %v1368 = vld [vmem:[#allocation5 + $0x154] sm:$0xf]
        %v1369 = vld [vmem:[#allocation5 + $0x158] sm:$0xf]
        %v1370 = vld [vmem:[#allocation5 + $0x15c] sm:$0xf]
        %v1371 = vld [vmem:[%s4 + $0x15] ss:$0 sm:$0xff]
        %v1372 = vpack.c.bf16 %v1337, %v1335
        %v1373 = vpack.c.bf16 %v1338, %v1336
        %v1406 = vunpack.c.l.b16 %v1339
        %v1407 = vunpack.c.l.b16 %v1340
        %v1408 = vunpack.c.l.b16 %v1341
        %v1409 = vunpack.c.l.b16 %v1342
        %v1410 = vunpack.c.l.b16 %v1343
        %v1411 = vunpack.c.l.b16 %v1344
        %v1412 = vunpack.c.l.b16 %v1345
        %v1413 = vunpack.c.l.b16 %v1346
        %v1414 = vunpack.c.l.b16 %v1347
        %v1415 = vunpack.c.l.b16 %v1348
        %v1416 = vunpack.c.l.b16 %v1349
        %v1417 = vunpack.c.l.b16 %v1350
        %v1418 = vunpack.c.l.b16 %v1351
        %v1419 = vunpack.c.l.b16 %v1352
        %v1420 = vunpack.c.l.b16 %v1353
        %v1421 = vunpack.c.l.b16 %v1354
        %v1422 = vunpack.c.l.b16 %v1355
        %v1423 = vunpack.c.l.b16 %v1356
        %v1424 = vunpack.c.l.b16 %v1357
        %v1425 = vunpack.c.l.b16 %v1358
        %v1426 = vunpack.c.l.b16 %v1359
        %v1427 = vunpack.c.l.b16 %v1360
        %v1428 = vunpack.c.l.b16 %v1361
        %v1429 = vunpack.c.l.b16 %v1362
        %v1430 = vunpack.c.l.b16 %v1363
        %v1431 = vunpack.c.l.b16 %v1364
        %v1432 = vunpack.c.l.b16 %v1365
        %v1433 = vunpack.c.l.b16 %v1366
        %v1434 = vunpack.c.l.b16 %v1367
        %v1435 = vunpack.c.l.b16 %v1368
        %v1436 = vunpack.c.l.b16 %v1369
        %v1437 = vunpack.c.l.b16 %v1370
        %v1438 = vpack.c.b16 %v1407, %v1406
        %v1439 = vpack.c.b16 %v1409, %v1408
        %v1440 = vpack.c.b16 %v1411, %v1410
        %v1441 = vpack.c.b16 %v1413, %v1412
        %v1442 = vpack.c.b16 %v1415, %v1414
        %v1443 = vpack.c.b16 %v1417, %v1416
        %v1444 = vpack.c.b16 %v1419, %v1418
        %v1445 = vpack.c.b16 %v1421, %v1420
        %v1446 = vpack.c.b16 %v1423, %v1422
        %v1447 = vpack.c.b16 %v1425, %v1424
        %v1448 = vpack.c.b16 %v1427, %v1426
        %v1449 = vpack.c.b16 %v1429, %v1428
        %v1450 = vpack.c.b16 %v1431, %v1430
        %v1451 = vpack.c.b16 %v1433, %v1432
        %v1452 = vpack.c.b16 %v1435, %v1434
        %v1453 = vpack.c.b16 %v1437, %v1436
        %1470 = vmatprep.subr.bf16.mxu0 0
        %1471 = vmatpush1.bf16.msra.mxu0 %v1445
        %1472 = vmatprep.subr.bf16.mxu0 0
        %1473 = vmatpush1.bf16.msra.mxu0 %v1444
        %1474 = vmatprep.subr.bf16.mxu0 0
        %1475 = vmatpush1.bf16.msra.mxu0 %v1443
        %1476 = vmatprep.subr.bf16.mxu0 0
        %1477 = vmatpush1.bf16.msra.mxu0 %v1442
        %1478 = vmatprep.subr.bf16.mxu0 0
        %1479 = vmatpush1.bf16.msra.mxu0 %v1441
        %1480 = vmatprep.subr.bf16.mxu0 0
        %1481 = vmatpush1.bf16.msra.mxu0 %v1440
        %1482 = vmatprep.subr.bf16.mxu0 0
        %1483 = vmatpush1.bf16.msra.mxu0 %v1439
        %1484 = vmatprep.subr.bf16.mxu0 0
        %1485 = vmatpush1.bf16.msra.mxu0 %v1438
        %1486 = vmatprep.subr.bf16.mxu0 0
        %1487 = vmatpush2.bf16.msra.mxu0 %v1453
        %1488 = vmatprep.subr.bf16.mxu0 0
        %1489 = vmatpush2.bf16.msra.mxu0 %v1452
        %1490 = vmatprep.subr.bf16.mxu0 0
        %1491 = vmatpush2.bf16.msra.mxu0 %v1451
        %1492 = vmatprep.subr.bf16.mxu0 0
        %1493 = vmatpush2.bf16.msra.mxu0 %v1450
        %1494 = vmatprep.subr.bf16.mxu0 0
        %1495 = vmatpush2.bf16.msra.mxu0 %v1449
        %1496 = vmatprep.subr.bf16.mxu0 0
        %1497 = vmatpush2.bf16.msra.mxu0 %v1448
        %1498 = vmatprep.subr.bf16.mxu0 0
        %1499 = vmatpush2.bf16.msra.mxu0 %v1447
        %1500 = vmatprep.subr.bf16.mxu0 0
        %1501 = vmatpush2.bf16.msra.mxu0 %v1446
        %1502 = vmatprep.mubr.bf16.mxu0 %v1373
        %1503 = vmatmul.mubr.bf16.gmra.mxu0 %v1372
        %v1504 = vpop.f32.mrf.mxu0
        %v1505 = vadd.f32 %v1371, %v1504
        %v1506 = vpop.f32.mrf.mxu0
        %v1507 = vpop.f32.mrf.mxu0
        %v1508 = vadd.f32 %v1371, %v1507
        %v1509 = vpop.f32.mrf.mxu0
        %1510 = vdwg.mxu0
        %1511 = vst [vmem:[%s290] sm:$0xff] %v1505
        %1512 = vst [vmem:[%s290 + $0x8] sm:$0xff] %v1508
        %1513 = vst [vmem:[%s312] sm:$0xff] %v914
        %1514 = vst [vmem:[%s312 + $0x8] sm:$0xff] %v917
        %s1515 = sand.u32 %s146, 1
        %s1516 = scalar_lea.sflag [#allocation4], %s1515
        %s1517 = sand.u32 %s146, 1
        %s1518 = smul.addr %s1517, 16
        %s1519 = scalar_lea.vmem [#allocation7], %s1518
        %p1520 = scmp.lt.s32.totalorder %s23, 3
        %s1521 = scalar_select %p1520, %s23, 3
        %s1522 = smul.addr %s1521, 2
        %s1523 = smul.addr %s1522, 8
        %s1524 = scalar_lea.vmem %s6, %s1523
        // Predicated region
        $region49: #{tabular_vae_forward.1} parent=39 // pred_check
          %p1525 = pneg %p156
        $region50: #{tabular_vae_forward.1} parent=39 // pred_check_branch
          %1527 = sbr.rel (%p1525) target = $region52
        $region51: #{tabular_vae_forward.1} parent=39 // pred_region
          %s1529 = ssub.s32 256, 256
          %1530 = vsyncadd %s1516, %s1529
          %s1531 = smul.addr %s23, 2
          %s1532 = smul.addr %s1531, 128
          %s1533 = scalar_lea.hbm %s5, %s1532
          %s1534 = sshll.u32 %s1519, 4
          %s1535 = int_to_ptr.vmem [resolvable:$true] %s1534
          %1540 = dma.vmem_to_hbm [thread:$0]  %s1535, 256, %s1533, %s1516, 128, 128, 8
        $region52: #{tabular_vae_forward.1} parent=39 // pred_fallthru
          _
        // Predicated region
        $region53: #{tabular_vae_forward.1} parent=39 // pred_check
          %p1541 = pneg %p182
        $region54: #{tabular_vae_forward.1} parent=39 // pred_check_branch
          %1543 = sbr.rel (%p1541) target = $region56
        $region55: #{tabular_vae_forward.1} parent=39 // pred_region
          _
        $region56: #{tabular_vae_forward.1} parent=39 // pred_fallthru
          _
      $region40: #{tabular_vae_forward.1} parent=5 // pred_fallthru
        _
      %p1544 = scmp.le.s32.totalorder 2, %s18
      // Predicated region
      $region57: #{tabular_vae_forward.1} parent=5 // pred_check
        %p1545 = pneg %p1544
      $region58: #{tabular_vae_forward.1} parent=5 // pred_check_branch
        %1547 = sbr.rel (%p1545) target = $region60
      $region59: #{tabular_vae_forward.1} parent=5 // pred_region
        %s1548 = ssub.s32 %s18, 2
        // Predicated region
        $region61: #{tabular_vae_forward.1} parent=59 // pred_check
          %p1549 = pneg %p162
        $region62: #{tabular_vae_forward.1} parent=59 // pred_check_branch
          %1551 = sbr.rel (%p1549) target = $region64
        $region63: #{tabular_vae_forward.1} parent=59 // pred_region
          %s1552 = sand.u32 %s147, 1
          %s1553 = scalar_lea.sflag [#allocation4], %s1552
          %s1554 = sand.u32 %s147, 1
          %s1555 = smul.addr %s1554, 16
          %s1556 = scalar_lea.vmem [#allocation7], %s1555
          %1557 = dma.done %s1553, 256
        $region64: #{tabular_vae_forward.1} parent=59 // pred_fallthru
          _
        // Predicated region
        $region65: #{tabular_vae_forward.1} parent=59 // pred_check
          %p1558 = pneg %p188
        $region66: #{tabular_vae_forward.1} parent=59 // pred_check_branch
          %1560 = sbr.rel (%p1558) target = $region68
        $region67: #{tabular_vae_forward.1} parent=59 // pred_region
          %p1561 = scmp.lt.s32.totalorder %s24, 3
          %s1562 = scalar_select %p1561, %s24, 3
          %s1563 = smul.addr %s1562, 2
          %s1564 = smul.addr %s1563, 8
          %s1565 = scalar_lea.vmem %s6, %s1564
        $region68: #{tabular_vae_forward.1} parent=59 // pred_fallthru
          _
      $region60: #{tabular_vae_forward.1} parent=5 // pred_fallthru
        _
    $region6: #{tabular_vae_forward.1} parent=1 // loop_footer
      %s22 = sadd.s32 1, %s18
    $region7: #{tabular_vae_forward.1} parent=1 // loop_footer_branch
      %17 = sbr.rel target = $region3
    $region8: #{tabular_vae_forward.1} parent=1 // loop_exit
      _
    %1566 = vsyncpa [#allocation3], 1
    %s1567 = scalar_lea.sflag [#allocation3], 1
    %1568 = vsyncpa %s1567, 1
    %1569 = vsyncpa [#allocation6], 1
    %1570 = vsyncpa [#allocation4], 1
    %s1571 = scalar_lea.sflag [#allocation4], 1
    %1572 = vsyncpa %s1571, 1

</llo_original>
